<compile_context>
chip_gen: v6e
topology: v6e:2x2x1
jax: 0.10.0
libtpu: 0.0.40
codegen_flags: <defaults>
</compile_context>

<pallas_src>
import functools

import jax
import jax.numpy as jnp
from jax import lax
from jax.experimental import pallas as pl
from jax.experimental.pallas import tpu as pltpu


def _round_up(x, m):
    return (x + m - 1) // m * m


def _rcab_kernel(x_ref, smask_ref, w1_ref, b1_ref, w2_ref, b2_ref,
                 wd_ref, bd_ref, wut_ref, bu_ref, out_ref,
                 xbig_ref, pat_ref, *, H, W, C, K, Bt, P):
    p = K // 2
    N = H * W
    slab = N + 2 * P                       # per-image slot in xbig (lane aligned)

    # ---- zero the halo wings ONCE per invocation (hoisted out of conv_same).
    # Only the lane-aligned P/2P regions between/around the image slots; the
    # image regions are fully rewritten by every conv.  Re-done every
    # invocation (not guarded by program_id==0) so it stays correct under
    # megacore grid partitioning, where per-core scratch never sees step 0.
    zP = jnp.zeros((C, P), jnp.bfloat16)
    z2P = jnp.zeros((C, 2 * P), jnp.bfloat16)
    for v in range(K):
        xbig_ref[v, :, 0:P] = zP
        for b in range(Bt):
            lo = b * slab + P + N
            if b + 1 < Bt:
                xbig_ref[v, :, lo:lo + 2 * P] = z2P     # right wing + next left wing
            else:
                xbig_ref[v, :, lo:lo + P] = zP          # last right wing

    smask = smask_ref[...]                 # (K, N) f32 source-validity masks

    def conv_same(get_img, w_ref):
        """KxK SAME conv over all Bt images as ONE im2col matmul.

        get_img(b) -> (C, N) f32 image b.  Returns (C, Bt*N) f32."""
        # K pre-masked bf16 copies of each image, lane-aligned at offset P of
        # its slab.  Variant v feeds every tap with dx == v: the source
        # columns that would wrap across the left/right image border are
        # zeroed in f32 before the cast, so every pat write below is a plain
        # copy (no per-tap bf16 mask multiplies).
        for b in range(Bt):
            img = get_img(b)                                   # (C, N) f32
            base = b * slab + P
            for v in range(K):
                im = img if v == p else img * smask[v:v + 1, :]
                xbig_ref[v, :, base:base + N] = im.astype(jnp.bfloat16)

        # (K*K*C, Bt*N) im2col patch matrix from statically shifted views.
        for dy in range(K):
            for dx in range(K):
                t = dy * K + dx
                sft = (dy - p) * W + (dx - p)
                for b in range(Bt):
                    start = b * slab + P + sft
                    pat_ref[t * C:(t + 1) * C, b * N:(b + 1) * N] = (
                        xbig_ref[dx, :, start:start + N])      # (C, N) bf16

        # one MXU push per conv over all Bt images, f32 accumulation.
        return jnp.dot(w_ref[...], pat_ref[...],
                       preferred_element_type=jnp.float32)     # (C, Bt*N)

    # conv1 -> ReLU -> conv2 (biases broadcast over all Bt*N columns).
    # At C=16 h1/h2 are only a few vregs; at C>=64 move them to VMEM scratch.
    h1 = jnp.maximum(conv_same(lambda b: x_ref[b], w1_ref) + b1_ref[...], 0.0)
    h2 = conv_same(lambda b: h1[:, b * N:(b + 1) * N], w2_ref) + b2_ref[...]

    # per-image channel attention: GAP -> 1x1 -> ReLU -> 1x1 -> sigmoid
    # (tiny, pure broadcasts + reductions, f32), then scale + residual with a
    # lane-dense store.
    for b in range(Bt):
        h2b = h2[:, b * N:(b + 1) * N]                         # (C, N)
        y = jnp.mean(h2b, axis=1, keepdims=True)               # (C, 1)
        z = jnp.maximum(jnp.sum(wd_ref[...] * y, axis=0, keepdims=True)
                        + bd_ref[...], 0.0)                    # (1, Cr)
        s = jax.nn.sigmoid(jnp.sum(wut_ref[...] * z, axis=1, keepdims=True)
                           + bu_ref[...])                      # (C, 1)
        out_ref[b] = (h2b * s + x_ref[b]).astype(out_ref.dtype)


def prepare_rcab(params, kernel_size, H, W):
    """One-off parameter/mask re-layout (hoisted out of the forward pass;
    RCAN applies this block hundreds of times)."""
    w1, b1, w2, b2, wd, bd, wu, bu = params
    K = kernel_size
    p = K // 2
    C = w1.shape[3]
    Cr = wd.shape[1]
    N = H * W

    # conv weights as bf16 im2col matrices (C_out, K*K*C_in); column index is
    # (dy*K + dx)*C + c_in, matching the pat row layout in the kernel.
    w1_mat = jnp.transpose(w1, (3, 0, 1, 2)).reshape(C, K * K * C).astype(jnp.bfloat16)
    w2_mat = jnp.transpose(w2, (3, 0, 1, 2)).reshape(C, K * K * C).astype(jnp.bfloat16)
    b1_c = b1.reshape(C, 1).astype(jnp.float32)
    b2_c = b2.reshape(C, 1).astype(jnp.float32)
    wd_f = wd.astype(jnp.float32)                   # (C, Cr)
    bd_r = bd.reshape(1, Cr).astype(jnp.float32)
    wu_t = wu.T.astype(jnp.float32)                 # (C, Cr)
    bu_c = bu.reshape(C, 1).astype(jnp.float32)

    # source-validity masks: variant dx of the zero-extended input has the
    # source columns zeroed that would otherwise wrap across the left/right
    # image border for any tap with that dx.
    wpos = jnp.arange(N, dtype=jnp.int32) % W
    smask = jnp.stack(
        [((wpos - (dx - p) >= 0) & (wpos - (dx - p) < W)) for dx in range(K)],
        axis=0).astype(jnp.float32)                 # (K, N)

    return dict(K=K, C=C, Cr=Cr, H=H, W=W, smask=smask,
                w1=w1_mat, b1=b1_c, w2=w2_mat, b2=b2_c,
                wd=wd_f, bd=bd_r, wut=wu_t, bu=bu_c)


def rcab_forward(x_nchw, prep, images_per_step=None):
    """RCAB forward.  x_nchw: (B, C, H, W) float32 (PyTorch convention).

    images_per_step: images processed per grid step.  Default = whole batch
    (single step; best per-step amortization on single-TC v5e/v6e).  On v7x
    pass B // 2 so the two "parallel" grid steps occupy both TensorCores.
    """
    B, C, H, W = x_nchw.shape
    K, Cr = prep["K"], prep["Cr"]
    assert (H, W, C) == (prep["H"], prep["W"], prep["C"])
    p = K // 2
    N = H * W
    S = p * W + p                           # max |flattened pixel shift| of a tap
    P = max(128, _round_up(S, 128))         # lane-aligned halo pad per image side
    slab = N + 2 * P

    Bt = B if images_per_step is None else images_per_step
    assert B % Bt == 0, "images_per_step must divide the batch"

    # native NCHW with spatial dims collapsed: channels on sublanes, pixels on
    # lanes (lane-dense at N multiple of 128); no wrapper transpose / pad.
    x_flat = x_nchw.reshape(B, C, N)

    kernel = functools.partial(_rcab_kernel, H=H, W=W, C=C, K=K, Bt=Bt, P=P)
    out_flat = pl.pallas_call(
        kernel,
        out_shape=jax.ShapeDtypeStruct((B, C, N), x_nchw.dtype),
        grid_spec=pltpu.PrefetchScalarGridSpec(
            num_scalar_prefetch=0,
            grid=(B // Bt,),
            in_specs=[
                pl.BlockSpec((Bt, C, N), lambda g: (g, 0, 0)),     # x
                pl.BlockSpec((K, N), lambda g: (0, 0)),            # edge masks
                pl.BlockSpec((C, K * K * C), lambda g: (0, 0)),    # w1 (im2col)
                pl.BlockSpec((C, 1), lambda g: (0, 0)),            # b1
                pl.BlockSpec((C, K * K * C), lambda g: (0, 0)),    # w2 (im2col)
                pl.BlockSpec((C, 1), lambda g: (0, 0)),            # b2
                pl.BlockSpec((C, Cr), lambda g: (0, 0)),           # wd
                pl.BlockSpec((1, Cr), lambda g: (0, 0)),           # bd
                pl.BlockSpec((C, Cr), lambda g: (0, 0)),           # wu^T
                pl.BlockSpec((C, 1), lambda g: (0, 0)),            # bu
            ],
            out_specs=pl.BlockSpec((Bt, C, N), lambda g: (g, 0, 0)),
            scratch_shapes=[
                pltpu.VMEM((K, C, Bt * slab), jnp.bfloat16),    # masked zero-ext inputs
                pltpu.VMEM((K * K * C, Bt * N), jnp.bfloat16),  # im2col patch matrix
            ],
        ),
        # x block is fully read before out_ref is written each step, so the
        # output can safely reuse the input HBM buffer.
        input_output_aliases={0: 0},
        compiler_params=pltpu.CompilerParams(
            dimension_semantics=("parallel",)),
    )(x_flat, prep["smask"], prep["w1"], prep["b1"], prep["w2"], prep["b2"],
      prep["wd"], prep["bd"], prep["wut"], prep["bu"])

    return out_flat.reshape(B, C, H, W)


def rcab_ref(x_nchw, params, kernel_size=3):
    """Pure-JAX reference with identical semantics (for verification)."""
    w1, b1, w2, b2, wd, bd, wu, bu = params
    x = jnp.transpose(x_nchw, (0, 2, 3, 1)).astype(jnp.float32)
    dn = ('NHWC', 'HWIO', 'NHWC')
    h = lax.conv_general_dilated(x, w1, (1, 1), 'SAME',
                                 dimension_numbers=dn) + b1
    h = jnp.maximum(h, 0.0)
    h = lax.conv_general_dilated(h, w2, (1, 1), 'SAME',
                                 dimension_numbers=dn) + b2
    y = jnp.mean(h, axis=(1, 2), keepdims=True)                 # (B,1,1,C)
    z = jnp.maximum(jnp.einsum('bijc,cd->bijd', y, wd) + bd, 0.0)
    s = jax.nn.sigmoid(jnp.einsum('bijd,dc->bijc', z, wu) + bu)
    out = h * s + x
    return jnp.transpose(out, (0, 3, 1, 2))


def make_params(key, n_feat, reduction, kernel_size):
    """Deterministic synthetic parameters matching the PyTorch module shapes."""
    Cr = n_feat // reduction
    ks = jax.random.split(key, 8)
    scale = 0.1
    w1 = scale * jax.random.normal(ks[0], (kernel_size, kernel_size, n_feat, n_feat), jnp.float32)
    b1 = scale * jax.random.normal(ks[1], (n_feat,), jnp.float32)
    w2 = scale * jax.random.normal(ks[2], (kernel_size, kernel_size, n_feat, n_feat), jnp.float32)
    b2 = scale * jax.random.normal(ks[3], (n_feat,), jnp.float32)
    wd = scale * jax.random.normal(ks[4], (n_feat, Cr), jnp.float32)
    bd = scale * jax.random.normal(ks[5], (Cr,), jnp.float32)
    wu = scale * jax.random.normal(ks[6], (Cr, n_feat), jnp.float32)
    bu = scale * jax.random.normal(ks[7], (n_feat,), jnp.float32)
    return (w1, b1, w2, b2, wd, bd, wu, bu)


if __name__ == "__main__":
    B, n_feat, H, W = 2, 16, 16, 16
    kernel_size, reduction = 3, 4   # res_scale=1, bn=False (PyTorch defaults)

    key = jax.random.PRNGKey(0)
    kx, kp = jax.random.split(key)
    x = jax.random.normal(kx, (B, n_feat, H, W), jnp.float32)   # NCHW like PyTorch
    params = make_params(kp, n_feat, reduction, kernel_size)

    # reference first (the Pallas call aliases its input/output HBM buffers)
    ref = jax.block_until_ready(rcab_ref(x, params, kernel_size))

    prep = prepare_rcab(params, kernel_size, H, W)   # once per model, not per call
    out = rcab_forward(x, prep)                      # whole batch in one step
    out = jax.block_until_ready(out)

    assert out.shape == ref.shape == (B, n_feat, H, W)
    # tolerance loosened for bf16 MXU operands (f32 accumulation kept)
    assert jnp.allclose(out, ref, atol=5e-2, rtol=5e-2), (
        float(jnp.max(jnp.abs(out - ref))))

    print("KERNEL_OK")
</pallas_src>

<mosaic_0001>
module attributes {stable_mosaic.version = 11 : i64} {
  func.func @_rcab_kernel(%arg0: i32, %arg1: memref<2x16x256xf32, #tpu.memory_space<vmem>>, %arg2: memref<3x256xf32, #tpu.memory_space<vmem>>, %arg3: memref<16x144xbf16, #tpu.memory_space<vmem>>, %arg4: memref<16x1xf32, #tpu.memory_space<vmem>>, %arg5: memref<16x144xbf16, #tpu.memory_space<vmem>>, %arg6: memref<16x1xf32, #tpu.memory_space<vmem>>, %arg7: memref<16x4xf32, #tpu.memory_space<vmem>>, %arg8: memref<1x4xf32, #tpu.memory_space<vmem>>, %arg9: memref<16x4xf32, #tpu.memory_space<vmem>>, %arg10: memref<16x1xf32, #tpu.memory_space<vmem>>, %arg11: memref<2x16x256xf32, #tpu.memory_space<vmem>>, %arg12: memref<3x16x1024xbf16, #tpu.memory_space<vmem>>, %arg13: memref<144x512xbf16, #tpu.memory_space<vmem>>) attributes {dimension_semantics = [#tpu.dimension_semantics<parallel>], iteration_bounds = array<i64: 1>, scalar_prefetch = 0 : i64, scratch_operands = 2 : i64, tpu.core_type = #tpu.core_type<tc>, window_params = [{transform_indices = @transform_0, window_bounds = array<i64: 2, 16, 256>}, {pipeline_mode = #tpu.pipeline_mode<synchronous>, transform_indices = @transform_1, window_bounds = array<i64: 3, 256>}, {pipeline_mode = #tpu.pipeline_mode<synchronous>, transform_indices = @transform_2, window_bounds = array<i64: 16, 144>}, {pipeline_mode = #tpu.pipeline_mode<synchronous>, transform_indices = @transform_3, window_bounds = array<i64: 16, 1>}, {pipeline_mode = #tpu.pipeline_mode<synchronous>, transform_indices = @transform_4, window_bounds = array<i64: 16, 144>}, {pipeline_mode = #tpu.pipeline_mode<synchronous>, transform_indices = @transform_5, window_bounds = array<i64: 16, 1>}, {pipeline_mode = #tpu.pipeline_mode<synchronous>, transform_indices = @transform_6, window_bounds = array<i64: 16, 4>}, {pipeline_mode = #tpu.pipeline_mode<synchronous>, transform_indices = @transform_7, window_bounds = array<i64: 1, 4>}, {pipeline_mode = #tpu.pipeline_mode<synchronous>, transform_indices = @transform_8, window_bounds = array<i64: 16, 4>}, {pipeline_mode = #tpu.pipeline_mode<synchronous>, transform_indices = @transform_9, window_bounds = array<i64: 16, 1>}, {transform_indices = @transform_10, window_bounds = array<i64: 2, 16, 256>}]} {
    %cst = arith.constant 0.000000e+00 : bf16
    %0 = vector.broadcast %cst : bf16 to vector<16x128xbf16>
    %cst_0 = arith.constant 0.000000e+00 : bf16
    %1 = vector.broadcast %cst_0 : bf16 to vector<16x256xbf16>
    %c0 = arith.constant 0 : index
    %c0_1 = arith.constant 0 : index
    %c0_2 = arith.constant 0 : index
    %2 = vector.load %arg12[%c0, %c0_1, %c0_2] : memref<3x16x1024xbf16, #tpu.memory_space<vmem>>, vector<1x16x128xbf16>
    %3 = vector.shape_cast %2 : vector<1x16x128xbf16> to vector<16x128xbf16>
    %4 = vector.shape_cast %0 : vector<16x128xbf16> to vector<1x16x128xbf16>
    tpu.vector_store %arg12[%c0, %c0_1, %c0_2], %4 {strides = array<i32>} : memref<3x16x1024xbf16, #tpu.memory_space<vmem>>, vector<1x16x128xbf16>,
    %c0_3 = arith.constant 0 : index
    %c0_4 = arith.constant 0 : index
    %c384 = arith.constant 384 : index
    %5 = vector.load %arg12[%c0_3, %c0_4, %c384] : memref<3x16x1024xbf16, #tpu.memory_space<vmem>>, vector<1x16x256xbf16>
    %6 = vector.shape_cast %5 : vector<1x16x256xbf16> to vector<16x256xbf16>
    %7 = vector.shape_cast %1 : vector<16x256xbf16> to vector<1x16x256xbf16>
    tpu.vector_store %arg12[%c0_3, %c0_4, %c384], %7 {strides = array<i32>} : memref<3x16x1024xbf16, #tpu.memory_space<vmem>>, vector<1x16x256xbf16>,
    %c0_5 = arith.constant 0 : index
    %c0_6 = arith.constant 0 : index
    %c896 = arith.constant 896 : index
    %8 = vector.load %arg12[%c0_5, %c0_6, %c896] : memref<3x16x1024xbf16, #tpu.memory_space<vmem>>, vector<1x16x128xbf16>
    %9 = vector.shape_cast %8 : vector<1x16x128xbf16> to vector<16x128xbf16>
    %10 = vector.shape_cast %0 : vector<16x128xbf16> to vector<1x16x128xbf16>
    tpu.vector_store %arg12[%c0_5, %c0_6, %c896], %10 {strides = array<i32>} : memref<3x16x1024xbf16, #tpu.memory_space<vmem>>, vector<1x16x128xbf16>,
    %c1 = arith.constant 1 : index
    %c0_7 = arith.constant 0 : index
    %c0_8 = arith.constant 0 : index
    %11 = vector.load %arg12[%c1, %c0_7, %c0_8] : memref<3x16x1024xbf16, #tpu.memory_space<vmem>>, vector<1x16x128xbf16>
    %12 = vector.shape_cast %11 : vector<1x16x128xbf16> to vector<16x128xbf16>
    %13 = vector.shape_cast %0 : vector<16x128xbf16> to vector<1x16x128xbf16>
    tpu.vector_store %arg12[%c1, %c0_7, %c0_8], %13 {strides = array<i32>} : memref<3x16x1024xbf16, #tpu.memory_space<vmem>>, vector<1x16x128xbf16>,
    %c1_9 = arith.constant 1 : index
    %c0_10 = arith.constant 0 : index
    %c384_11 = arith.constant 384 : index
    %14 = vector.load %arg12[%c1_9, %c0_10, %c384_11] : memref<3x16x1024xbf16, #tpu.memory_space<vmem>>, vector<1x16x256xbf16>
    %15 = vector.shape_cast %14 : vector<1x16x256xbf16> to vector<16x256xbf16>
    %16 = vector.shape_cast %1 : vector<16x256xbf16> to vector<1x16x256xbf16>
    tpu.vector_store %arg12[%c1_9, %c0_10, %c384_11], %16 {strides = array<i32>} : memref<3x16x1024xbf16, #tpu.memory_space<vmem>>, vector<1x16x256xbf16>,
    %c1_12 = arith.constant 1 : index
    %c0_13 = arith.constant 0 : index
    %c896_14 = arith.constant 896 : index
    %17 = vector.load %arg12[%c1_12, %c0_13, %c896_14] : memref<3x16x1024xbf16, #tpu.memory_space<vmem>>, vector<1x16x128xbf16>
    %18 = vector.shape_cast %17 : vector<1x16x128xbf16> to vector<16x128xbf16>
    %19 = vector.shape_cast %0 : vector<16x128xbf16> to vector<1x16x128xbf16>
    tpu.vector_store %arg12[%c1_12, %c0_13, %c896_14], %19 {strides = array<i32>} : memref<3x16x1024xbf16, #tpu.memory_space<vmem>>, vector<1x16x128xbf16>,
    %c2 = arith.constant 2 : index
    %c0_15 = arith.constant 0 : index
    %c0_16 = arith.constant 0 : index
    %20 = vector.load %arg12[%c2, %c0_15, %c0_16] : memref<3x16x1024xbf16, #tpu.memory_space<vmem>>, vector<1x16x128xbf16>
    %21 = vector.shape_cast %20 : vector<1x16x128xbf16> to vector<16x128xbf16>
    %22 = vector.shape_cast %0 : vector<16x128xbf16> to vector<1x16x128xbf16>
    tpu.vector_store %arg12[%c2, %c0_15, %c0_16], %22 {strides = array<i32>} : memref<3x16x1024xbf16, #tpu.memory_space<vmem>>, vector<1x16x128xbf16>,
    %c2_17 = arith.constant 2 : index
    %c0_18 = arith.constant 0 : index
    %c384_19 = arith.constant 384 : index
    %23 = vector.load %arg12[%c2_17, %c0_18, %c384_19] : memref<3x16x1024xbf16, #tpu.memory_space<vmem>>, vector<1x16x256xbf16>
    %24 = vector.shape_cast %23 : vector<1x16x256xbf16> to vector<16x256xbf16>
    %25 = vector.shape_cast %1 : vector<16x256xbf16> to vector<1x16x256xbf16>
    tpu.vector_store %arg12[%c2_17, %c0_18, %c384_19], %25 {strides = array<i32>} : memref<3x16x1024xbf16, #tpu.memory_space<vmem>>, vector<1x16x256xbf16>,
    %c2_20 = arith.constant 2 : index
    %c0_21 = arith.constant 0 : index
    %c896_22 = arith.constant 896 : index
    %26 = vector.load %arg12[%c2_20, %c0_21, %c896_22] : memref<3x16x1024xbf16, #tpu.memory_space<vmem>>, vector<1x16x128xbf16>
    %27 = vector.shape_cast %26 : vector<1x16x128xbf16> to vector<16x128xbf16>
    %28 = vector.shape_cast %0 : vector<16x128xbf16> to vector<1x16x128xbf16>
    tpu.vector_store %arg12[%c2_20, %c0_21, %c896_22], %28 {strides = array<i32>} : memref<3x16x1024xbf16, #tpu.memory_space<vmem>>, vector<1x16x128xbf16>,
    %c0_23 = arith.constant 0 : index
    %c0_24 = arith.constant 0 : index
    %29 = vector.load %arg2[%c0_23, %c0_24] : memref<3x256xf32, #tpu.memory_space<vmem>>, vector<3x256xf32>
    %c0_25 = arith.constant 0 : index
    %c0_26 = arith.constant 0 : index
    %c0_27 = arith.constant 0 : index
    %30 = vector.load %arg1[%c0_25, %c0_26, %c0_27] : memref<2x16x256xf32, #tpu.memory_space<vmem>>, vector<1x16x256xf32>
    %31 = vector.shape_cast %30 : vector<1x16x256xf32> to vector<16x256xf32>
    %32 = vector.extract_strided_slice %29 {offsets = [0, 0], sizes = [1, 256], strides = [1, 1]} : vector<3x256xf32> to vector<1x256xf32>
    %33 = vector.broadcast %32 : vector<1x256xf32> to vector<16x256xf32>
    %34 = arith.mulf %31, %33 : vector<16x256xf32>
    %35 = arith.truncf %34 : vector<16x256xf32> to vector<16x256xbf16>
    %c0_28 = arith.constant 0 : index
    %c0_29 = arith.constant 0 : index
    %c128 = arith.constant 128 : index
    %36 = vector.load %arg12[%c0_28, %c0_29, %c128] : memref<3x16x1024xbf16, #tpu.memory_space<vmem>>, vector<1x16x256xbf16>
    %37 = vector.shape_cast %36 : vector<1x16x256xbf16> to vector<16x256xbf16>
    %38 = vector.shape_cast %35 : vector<16x256xbf16> to vector<1x16x256xbf16>
    tpu.vector_store %arg12[%c0_28, %c0_29, %c128], %38 {strides = array<i32>} : memref<3x16x1024xbf16, #tpu.memory_space<vmem>>, vector<1x16x256xbf16>,
    %39 = arith.truncf %31 : vector<16x256xf32> to vector<16x256xbf16>
    %c1_30 = arith.constant 1 : index
    %c0_31 = arith.constant 0 : index
    %c128_32 = arith.constant 128 : index
    %40 = vector.load %arg12[%c1_30, %c0_31, %c128_32] : memref<3x16x1024xbf16, #tpu.memory_space<vmem>>, vector<1x16x256xbf16>
    %41 = vector.shape_cast %40 : vector<1x16x256xbf16> to vector<16x256xbf16>
    %42 = vector.shape_cast %39 : vector<16x256xbf16> to vector<1x16x256xbf16>
    tpu.vector_store %arg12[%c1_30, %c0_31, %c128_32], %42 {strides = array<i32>} : memref<3x16x1024xbf16, #tpu.memory_space<vmem>>, vector<1x16x256xbf16>,
    %43 = vector.extract_strided_slice %29 {offsets = [2, 0], sizes = [1, 256], strides = [1, 1]} : vector<3x256xf32> to vector<1x256xf32>
    %44 = vector.broadcast %43 : vector<1x256xf32> to vector<16x256xf32>
    %45 = arith.mulf %31, %44 : vector<16x256xf32>
    %46 = arith.truncf %45 : vector<16x256xf32> to vector<16x256xbf16>
    %c2_33 = arith.constant 2 : index
    %c0_34 = arith.constant 0 : index
    %c128_35 = arith.constant 128 : index
    %47 = vector.load %arg12[%c2_33, %c0_34, %c128_35] : memref<3x16x1024xbf16, #tpu.memory_space<vmem>>, vector<1x16x256xbf16>
    %48 = vector.shape_cast %47 : vector<1x16x256xbf16> to vector<16x256xbf16>
    %49 = vector.shape_cast %46 : vector<16x256xbf16> to vector<1x16x256xbf16>
    tpu.vector_store %arg12[%c2_33, %c0_34, %c128_35], %49 {strides = array<i32>} : memref<3x16x1024xbf16, #tpu.memory_space<vmem>>, vector<1x16x256xbf16>,
    %c1_36 = arith.constant 1 : index
    %c0_37 = arith.constant 0 : index
    %c0_38 = arith.constant 0 : index
    %50 = vector.load %arg1[%c1_36, %c0_37, %c0_38] : memref<2x16x256xf32, #tpu.memory_space<vmem>>, vector<1x16x256xf32>
    %51 = vector.shape_cast %50 : vector<1x16x256xf32> to vector<16x256xf32>
    %52 = vector.extract_strided_slice %29 {offsets = [0, 0], sizes = [1, 256], strides = [1, 1]} : vector<3x256xf32> to vector<1x256xf32>
    %53 = vector.broadcast %52 : vector<1x256xf32> to vector<16x256xf32>
    %54 = arith.mulf %51, %53 : vector<16x256xf32>
    %55 = arith.truncf %54 : vector<16x256xf32> to vector<16x256xbf16>
    %c0_39 = arith.constant 0 : index
    %c0_40 = arith.constant 0 : index
    %c640 = arith.constant 640 : index
    %56 = vector.load %arg12[%c0_39, %c0_40, %c640] : memref<3x16x1024xbf16, #tpu.memory_space<vmem>>, vector<1x16x256xbf16>
    %57 = vector.shape_cast %56 : vector<1x16x256xbf16> to vector<16x256xbf16>
    %58 = vector.shape_cast %55 : vector<16x256xbf16> to vector<1x16x256xbf16>
    tpu.vector_store %arg12[%c0_39, %c0_40, %c640], %58 {strides = array<i32>} : memref<3x16x1024xbf16, #tpu.memory_space<vmem>>, vector<1x16x256xbf16>,
    %59 = arith.truncf %51 : vector<16x256xf32> to vector<16x256xbf16>
    %c1_41 = arith.constant 1 : index
    %c0_42 = arith.constant 0 : index
    %c640_43 = arith.constant 640 : index
    %60 = vector.load %arg12[%c1_41, %c0_42, %c640_43] : memref<3x16x1024xbf16, #tpu.memory_space<vmem>>, vector<1x16x256xbf16>
    %61 = vector.shape_cast %60 : vector<1x16x256xbf16> to vector<16x256xbf16>
    %62 = vector.shape_cast %59 : vector<16x256xbf16> to vector<1x16x256xbf16>
    tpu.vector_store %arg12[%c1_41, %c0_42, %c640_43], %62 {strides = array<i32>} : memref<3x16x1024xbf16, #tpu.memory_space<vmem>>, vector<1x16x256xbf16>,
    %63 = vector.extract_strided_slice %29 {offsets = [2, 0], sizes = [1, 256], strides = [1, 1]} : vector<3x256xf32> to vector<1x256xf32>
    %64 = vector.broadcast %63 : vector<1x256xf32> to vector<16x256xf32>
    %65 = arith.mulf %51, %64 : vector<16x256xf32>
    %66 = arith.truncf %65 : vector<16x256xf32> to vector<16x256xbf16>
    %c2_44 = arith.constant 2 : index
    %c0_45 = arith.constant 0 : index
    %c640_46 = arith.constant 640 : index
    %67 = vector.load %arg12[%c2_44, %c0_45, %c640_46] : memref<3x16x1024xbf16, #tpu.memory_space<vmem>>, vector<1x16x256xbf16>
    %68 = vector.shape_cast %67 : vector<1x16x256xbf16> to vector<16x256xbf16>
    %69 = vector.shape_cast %66 : vector<16x256xbf16> to vector<1x16x256xbf16>
    tpu.vector_store %arg12[%c2_44, %c0_45, %c640_46], %69 {strides = array<i32>} : memref<3x16x1024xbf16, #tpu.memory_space<vmem>>, vector<1x16x256xbf16>,
    %c0_47 = arith.constant 0 : index
    %c0_48 = arith.constant 0 : index
    %c111 = arith.constant 111 : index
    %70 = vector.load %arg12[%c0_47, %c0_48, %c111] : memref<3x16x1024xbf16, #tpu.memory_space<vmem>>, vector<1x16x256xbf16>
    %71 = vector.shape_cast %70 : vector<1x16x256xbf16> to vector<16x256xbf16>
    %c0_49 = arith.constant 0 : index
    %c0_50 = arith.constant 0 : index
    %72 = vector.load %arg13[%c0_49, %c0_50] : memref<144x512xbf16, #tpu.memory_space<vmem>>, vector<16x256xbf16>
    tpu.vector_store %arg13[%c0_49, %c0_50], %71 {strides = array<i32>} : memref<144x512xbf16, #tpu.memory_space<vmem>>, vector<16x256xbf16>,
    %c0_51 = arith.constant 0 : index
    %c0_52 = arith.constant 0 : index
    %c623 = arith.constant 623 : index
    %73 = vector.load %arg12[%c0_51, %c0_52, %c623] : memref<3x16x1024xbf16, #tpu.memory_space<vmem>>, vector<1x16x256xbf16>
    %74 = vector.shape_cast %73 : vector<1x16x256xbf16> to vector<16x256xbf16>
    %c0_53 = arith.constant 0 : index
    %c256 = arith.constant 256 : index
    %75 = vector.load %arg13[%c0_53, %c256] : memref<144x512xbf16, #tpu.memory_space<vmem>>, vector<16x256xbf16>
    tpu.vector_store %arg13[%c0_53, %c256], %74 {strides = array<i32>} : memref<144x512xbf16, #tpu.memory_space<vmem>>, vector<16x256xbf16>,
    %c1_54 = arith.constant 1 : index
    %c0_55 = arith.constant 0 : index
    %c112 = arith.constant 112 : index
    %76 = vector.load %arg12[%c1_54, %c0_55, %c112] : memref<3x16x1024xbf16, #tpu.memory_space<vmem>>, vector<1x16x256xbf16>
    %77 = vector.shape_cast %76 : vector<1x16x256xbf16> to vector<16x256xbf16>
    %c16 = arith.constant 16 : index
    %c0_56 = arith.constant 0 : index
    %78 = vector.load %arg13[%c16, %c0_56] : memref<144x512xbf16, #tpu.memory_space<vmem>>, vector<16x256xbf16>
    tpu.vector_store %arg13[%c16, %c0_56], %77 {strides = array<i32>} : memref<144x512xbf16, #tpu.memory_space<vmem>>, vector<16x256xbf16>,
    %c1_57 = arith.constant 1 : index
    %c0_58 = arith.constant 0 : index
    %c624 = arith.constant 624 : index
    %79 = vector.load %arg12[%c1_57, %c0_58, %c624] : memref<3x16x1024xbf16, #tpu.memory_space<vmem>>, vector<1x16x256xbf16>
    %80 = vector.shape_cast %79 : vector<1x16x256xbf16> to vector<16x256xbf16>
    %c16_59 = arith.constant 16 : index
    %c256_60 = arith.constant 256 : index
    %81 = vector.load %arg13[%c16_59, %c256_60] : memref<144x512xbf16, #tpu.memory_space<vmem>>, vector<16x256xbf16>
    tpu.vector_store %arg13[%c16_59, %c256_60], %80 {strides = array<i32>} : memref<144x512xbf16, #tpu.memory_space<vmem>>, vector<16x256xbf16>,
    %c2_61 = arith.constant 2 : index
    %c0_62 = arith.constant 0 : index
    %c113 = arith.constant 113 : index
    %82 = vector.load %arg12[%c2_61, %c0_62, %c113] : memref<3x16x1024xbf16, #tpu.memory_space<vmem>>, vector<1x16x256xbf16>
    %83 = vector.shape_cast %82 : vector<1x16x256xbf16> to vector<16x256xbf16>
    %c32 = arith.constant 32 : index
    %c0_63 = arith.constant 0 : index
    %84 = vector.load %arg13[%c32, %c0_63] : memref<144x512xbf16, #tpu.memory_space<vmem>>, vector<16x256xbf16>
    tpu.vector_store %arg13[%c32, %c0_63], %83 {strides = array<i32>} : memref<144x512xbf16, #tpu.memory_space<vmem>>, vector<16x256xbf16>,
    %c2_64 = arith.constant 2 : index
    %c0_65 = arith.constant 0 : index
    %c625 = arith.constant 625 : index
    %85 = vector.load %arg12[%c2_64, %c0_65, %c625] : memref<3x16x1024xbf16, #tpu.memory_space<vmem>>, vector<1x16x256xbf16>
    %86 = vector.shape_cast %85 : vector<1x16x256xbf16> to vector<16x256xbf16>
    %c32_66 = arith.constant 32 : index
    %c256_67 = arith.constant 256 : index
    %87 = vector.load %arg13[%c32_66, %c256_67] : memref<144x512xbf16, #tpu.memory_space<vmem>>, vector<16x256xbf16>
    tpu.vector_store %arg13[%c32_66, %c256_67], %86 {strides = array<i32>} : memref<144x512xbf16, #tpu.memory_space<vmem>>, vector<16x256xbf16>,
    %c0_68 = arith.constant 0 : index
    %c0_69 = arith.constant 0 : index
    %c127 = arith.constant 127 : index
    %88 = vector.load %arg12[%c0_68, %c0_69, %c127] : memref<3x16x1024xbf16, #tpu.memory_space<vmem>>, vector<1x16x256xbf16>
    %89 = vector.shape_cast %88 : vector<1x16x256xbf16> to vector<16x256xbf16>
    %c48 = arith.constant 48 : index
    %c0_70 = arith.constant 0 : index
    %90 = vector.load %arg13[%c48, %c0_70] : memref<144x512xbf16, #tpu.memory_space<vmem>>, vector<16x256xbf16>
    tpu.vector_store %arg13[%c48, %c0_70], %89 {strides = array<i32>} : memref<144x512xbf16, #tpu.memory_space<vmem>>, vector<16x256xbf16>,
    %c0_71 = arith.constant 0 : index
    %c0_72 = arith.constant 0 : index
    %c639 = arith.constant 639 : index
    %91 = vector.load %arg12[%c0_71, %c0_72, %c639] : memref<3x16x1024xbf16, #tpu.memory_space<vmem>>, vector<1x16x256xbf16>
    %92 = vector.shape_cast %91 : vector<1x16x256xbf16> to vector<16x256xbf16>
    %c48_73 = arith.constant 48 : index
    %c256_74 = arith.constant 256 : index
    %93 = vector.load %arg13[%c48_73, %c256_74] : memref<144x512xbf16, #tpu.memory_space<vmem>>, vector<16x256xbf16>
    tpu.vector_store %arg13[%c48_73, %c256_74], %92 {strides = array<i32>} : memref<144x512xbf16, #tpu.memory_space<vmem>>, vector<16x256xbf16>,
    %c1_75 = arith.constant 1 : index
    %c0_76 = arith.constant 0 : index
    %c128_77 = arith.constant 128 : index
    %94 = vector.load %arg12[%c1_75, %c0_76, %c128_77] : memref<3x16x1024xbf16, #tpu.memory_space<vmem>>, vector<1x16x256xbf16>
    %95 = vector.shape_cast %94 : vector<1x16x256xbf16> to vector<16x256xbf16>
    %c64 = arith.constant 64 : index
    %c0_78 = arith.constant 0 : index
    %96 = vector.load %arg13[%c64, %c0_78] : memref<144x512xbf16, #tpu.memory_space<vmem>>, vector<16x256xbf16>
    tpu.vector_store %arg13[%c64, %c0_78], %95 {strides = array<i32>} : memref<144x512xbf16, #tpu.memory_space<vmem>>, vector<16x256xbf16>,
    %c1_79 = arith.constant 1 : index
    %c0_80 = arith.constant 0 : index
    %c640_81 = arith.constant 640 : index
    %97 = vector.load %arg12[%c1_79, %c0_80, %c640_81] : memref<3x16x1024xbf16, #tpu.memory_space<vmem>>, vector<1x16x256xbf16>
    %98 = vector.shape_cast %97 : vector<1x16x256xbf16> to vector<16x256xbf16>
    %c64_82 = arith.constant 64 : index
    %c256_83 = arith.constant 256 : index
    %99 = vector.load %arg13[%c64_82, %c256_83] : memref<144x512xbf16, #tpu.memory_space<vmem>>, vector<16x256xbf16>
    tpu.vector_store %arg13[%c64_82, %c256_83], %98 {strides = array<i32>} : memref<144x512xbf16, #tpu.memory_space<vmem>>, vector<16x256xbf16>,
    %c2_84 = arith.constant 2 : index
    %c0_85 = arith.constant 0 : index
    %c129 = arith.constant 129 : index
    %100 = vector.load %arg12[%c2_84, %c0_85, %c129] : memref<3x16x1024xbf16, #tpu.memory_space<vmem>>, vector<1x16x256xbf16>
    %101 = vector.shape_cast %100 : vector<1x16x256xbf16> to vector<16x256xbf16>
    %c80 = arith.constant 80 : index
    %c0_86 = arith.constant 0 : index
    %102 = vector.load %arg13[%c80, %c0_86] : memref<144x512xbf16, #tpu.memory_space<vmem>>, vector<16x256xbf16>
    tpu.vector_store %arg13[%c80, %c0_86], %101 {strides = array<i32>} : memref<144x512xbf16, #tpu.memory_space<vmem>>, vector<16x256xbf16>,
    %c2_87 = arith.constant 2 : index
    %c0_88 = arith.constant 0 : index
    %c641 = arith.constant 641 : index
    %103 = vector.load %arg12[%c2_87, %c0_88, %c641] : memref<3x16x1024xbf16, #tpu.memory_space<vmem>>, vector<1x16x256xbf16>
    %104 = vector.shape_cast %103 : vector<1x16x256xbf16> to vector<16x256xbf16>
    %c80_89 = arith.constant 80 : index
    %c256_90 = arith.constant 256 : index
    %105 = vector.load %arg13[%c80_89, %c256_90] : memref<144x512xbf16, #tpu.memory_space<vmem>>, vector<16x256xbf16>
    tpu.vector_store %arg13[%c80_89, %c256_90], %104 {strides = array<i32>} : memref<144x512xbf16, #tpu.memory_space<vmem>>, vector<16x256xbf16>,
    %c0_91 = arith.constant 0 : index
    %c0_92 = arith.constant 0 : index
    %c143 = arith.constant 143 : index
    %106 = vector.load %arg12[%c0_91, %c0_92, %c143] : memref<3x16x1024xbf16, #tpu.memory_space<vmem>>, vector<1x16x256xbf16>
    %107 = vector.shape_cast %106 : vector<1x16x256xbf16> to vector<16x256xbf16>
    %c96 = arith.constant 96 : index
    %c0_93 = arith.constant 0 : index
    %108 = vector.load %arg13[%c96, %c0_93] : memref<144x512xbf16, #tpu.memory_space<vmem>>, vector<16x256xbf16>
    tpu.vector_store %arg13[%c96, %c0_93], %107 {strides = array<i32>} : memref<144x512xbf16, #tpu.memory_space<vmem>>, vector<16x256xbf16>,
    %c0_94 = arith.constant 0 : index
    %c0_95 = arith.constant 0 : index
    %c655 = arith.constant 655 : index
    %109 = vector.load %arg12[%c0_94, %c0_95, %c655] : memref<3x16x1024xbf16, #tpu.memory_space<vmem>>, vector<1x16x256xbf16>
    %110 = vector.shape_cast %109 : vector<1x16x256xbf16> to vector<16x256xbf16>
    %c96_96 = arith.constant 96 : index
    %c256_97 = arith.constant 256 : index
    %111 = vector.load %arg13[%c96_96, %c256_97] : memref<144x512xbf16, #tpu.memory_space<vmem>>, vector<16x256xbf16>
    tpu.vector_store %arg13[%c96_96, %c256_97], %110 {strides = array<i32>} : memref<144x512xbf16, #tpu.memory_space<vmem>>, vector<16x256xbf16>,
    %c1_98 = arith.constant 1 : index
    %c0_99 = arith.constant 0 : index
    %c144 = arith.constant 144 : index
    %112 = vector.load %arg12[%c1_98, %c0_99, %c144] : memref<3x16x1024xbf16, #tpu.memory_space<vmem>>, vector<1x16x256xbf16>
    %113 = vector.shape_cast %112 : vector<1x16x256xbf16> to vector<16x256xbf16>
    %c112_100 = arith.constant 112 : index
    %c0_101 = arith.constant 0 : index
    %114 = vector.load %arg13[%c112_100, %c0_101] : memref<144x512xbf16, #tpu.memory_space<vmem>>, vector<16x256xbf16>
    tpu.vector_store %arg13[%c112_100, %c0_101], %113 {strides = array<i32>} : memref<144x512xbf16, #tpu.memory_space<vmem>>, vector<16x256xbf16>,
    %c1_102 = arith.constant 1 : index
    %c0_103 = arith.constant 0 : index
    %c656 = arith.constant 656 : index
    %115 = vector.load %arg12[%c1_102, %c0_103, %c656] : memref<3x16x1024xbf16, #tpu.memory_space<vmem>>, vector<1x16x256xbf16>
    %116 = vector.shape_cast %115 : vector<1x16x256xbf16> to vector<16x256xbf16>
    %c112_104 = arith.constant 112 : index
    %c256_105 = arith.constant 256 : index
    %117 = vector.load %arg13[%c112_104, %c256_105] : memref<144x512xbf16, #tpu.memory_space<vmem>>, vector<16x256xbf16>
    tpu.vector_store %arg13[%c112_104, %c256_105], %116 {strides = array<i32>} : memref<144x512xbf16, #tpu.memory_space<vmem>>, vector<16x256xbf16>,
    %c2_106 = arith.constant 2 : index
    %c0_107 = arith.constant 0 : index
    %c145 = arith.constant 145 : index
    %118 = vector.load %arg12[%c2_106, %c0_107, %c145] : memref<3x16x1024xbf16, #tpu.memory_space<vmem>>, vector<1x16x256xbf16>
    %119 = vector.shape_cast %118 : vector<1x16x256xbf16> to vector<16x256xbf16>
    %c128_108 = arith.constant 128 : index
    %c0_109 = arith.constant 0 : index
    %120 = vector.load %arg13[%c128_108, %c0_109] : memref<144x512xbf16, #tpu.memory_space<vmem>>, vector<16x256xbf16>
    tpu.vector_store %arg13[%c128_108, %c0_109], %119 {strides = array<i32>} : memref<144x512xbf16, #tpu.memory_space<vmem>>, vector<16x256xbf16>,
    %c2_110 = arith.constant 2 : index
    %c0_111 = arith.constant 0 : index
    %c657 = arith.constant 657 : index
    %121 = vector.load %arg12[%c2_110, %c0_111, %c657] : memref<3x16x1024xbf16, #tpu.memory_space<vmem>>, vector<1x16x256xbf16>
    %122 = vector.shape_cast %121 : vector<1x16x256xbf16> to vector<16x256xbf16>
    %c128_112 = arith.constant 128 : index
    %c256_113 = arith.constant 256 : index
    %123 = vector.load %arg13[%c128_112, %c256_113] : memref<144x512xbf16, #tpu.memory_space<vmem>>, vector<16x256xbf16>
    tpu.vector_store %arg13[%c128_112, %c256_113], %122 {strides = array<i32>} : memref<144x512xbf16, #tpu.memory_space<vmem>>, vector<16x256xbf16>,
    %c0_114 = arith.constant 0 : index
    %c0_115 = arith.constant 0 : index
    %124 = vector.load %arg3[%c0_114, %c0_115] : memref<16x144xbf16, #tpu.memory_space<vmem>>, vector<16x144xbf16>
    %c0_116 = arith.constant 0 : index
    %c0_117 = arith.constant 0 : index
    %125 = vector.load %arg13[%c0_116, %c0_117] : memref<144x512xbf16, #tpu.memory_space<vmem>>, vector<144x512xbf16>
    %cst_118 = arith.constant dense<0.000000e+00> : vector<16x512xf32>
    %126 = tpu.matmul %124, %125, %cst_118 {dimension_numbers = #tpu.dot_dimension_numbers<[1], [0], [0], [1], [0, 0, 1, 1], [], []>} : vector<16x144xbf16>, vector<144x512xbf16>, vector<16x512xf32> -> vector<16x512xf32>
    %c0_119 = arith.constant 0 : index
    %c0_120 = arith.constant 0 : index
    %127 = vector.load %arg4[%c0_119, %c0_120] : memref<16x1xf32, #tpu.memory_space<vmem>>, vector<16x1xf32>
    %128 = vector.broadcast %127 : vector<16x1xf32> to vector<16x512xf32>
    %129 = arith.addf %126, %128 : vector<16x512xf32>
    %cst_121 = arith.constant 0.000000e+00 : f32
    %130 = vector.broadcast %cst_121 : f32 to vector<16x512xf32>
    %131 = arith.maximumf %129, %130 : vector<16x512xf32>
    %132 = vector.extract_strided_slice %131 {offsets = [0, 0], sizes = [16, 256], strides = [1, 1]} : vector<16x512xf32> to vector<16x256xf32>
    %133 = vector.extract_strided_slice %29 {offsets = [0, 0], sizes = [1, 256], strides = [1, 1]} : vector<3x256xf32> to vector<1x256xf32>
    %134 = vector.broadcast %133 : vector<1x256xf32> to vector<16x256xf32>
    %135 = arith.mulf %132, %134 : vector<16x256xf32>
    %136 = arith.truncf %135 : vector<16x256xf32> to vector<16x256xbf16>
    %c0_122 = arith.constant 0 : index
    %c0_123 = arith.constant 0 : index
    %c128_124 = arith.constant 128 : index
    %137 = vector.load %arg12[%c0_122, %c0_123, %c128_124] : memref<3x16x1024xbf16, #tpu.memory_space<vmem>>, vector<1x16x256xbf16>
    %138 = vector.shape_cast %137 : vector<1x16x256xbf16> to vector<16x256xbf16>
    %139 = vector.shape_cast %136 : vector<16x256xbf16> to vector<1x16x256xbf16>
    tpu.vector_store %arg12[%c0_122, %c0_123, %c128_124], %139 {strides = array<i32>} : memref<3x16x1024xbf16, #tpu.memory_space<vmem>>, vector<1x16x256xbf16>,
    %140 = arith.truncf %132 : vector<16x256xf32> to vector<16x256xbf16>
    %c1_125 = arith.constant 1 : index
    %c0_126 = arith.constant 0 : index
    %c128_127 = arith.constant 128 : index
    %141 = vector.load %arg12[%c1_125, %c0_126, %c128_127] : memref<3x16x1024xbf16, #tpu.memory_space<vmem>>, vector<1x16x256xbf16>
    %142 = vector.shape_cast %141 : vector<1x16x256xbf16> to vector<16x256xbf16>
    %143 = vector.shape_cast %140 : vector<16x256xbf16> to vector<1x16x256xbf16>
    tpu.vector_store %arg12[%c1_125, %c0_126, %c128_127], %143 {strides = array<i32>} : memref<3x16x1024xbf16, #tpu.memory_space<vmem>>, vector<1x16x256xbf16>,
    %144 = vector.extract_strided_slice %29 {offsets = [2, 0], sizes = [1, 256], strides = [1, 1]} : vector<3x256xf32> to vector<1x256xf32>
    %145 = vector.broadcast %144 : vector<1x256xf32> to vector<16x256xf32>
    %146 = arith.mulf %132, %145 : vector<16x256xf32>
    %147 = arith.truncf %146 : vector<16x256xf32> to vector<16x256xbf16>
    %c2_128 = arith.constant 2 : index
    %c0_129 = arith.constant 0 : index
    %c128_130 = arith.constant 128 : index
    %148 = vector.load %arg12[%c2_128, %c0_129, %c128_130] : memref<3x16x1024xbf16, #tpu.memory_space<vmem>>, vector<1x16x256xbf16>
    %149 = vector.shape_cast %148 : vector<1x16x256xbf16> to vector<16x256xbf16>
    %150 = vector.shape_cast %147 : vector<16x256xbf16> to vector<1x16x256xbf16>
    tpu.vector_store %arg12[%c2_128, %c0_129, %c128_130], %150 {strides = array<i32>} : memref<3x16x1024xbf16, #tpu.memory_space<vmem>>, vector<1x16x256xbf16>,
    %151 = vector.extract_strided_slice %131 {offsets = [0, 256], sizes = [16, 256], strides = [1, 1]} : vector<16x512xf32> to vector<16x256xf32>
    %152 = vector.extract_strided_slice %29 {offsets = [0, 0], sizes = [1, 256], strides = [1, 1]} : vector<3x256xf32> to vector<1x256xf32>
    %153 = vector.broadcast %152 : vector<1x256xf32> to vector<16x256xf32>
    %154 = arith.mulf %151, %153 : vector<16x256xf32>
    %155 = arith.truncf %154 : vector<16x256xf32> to vector<16x256xbf16>
    %c0_131 = arith.constant 0 : index
    %c0_132 = arith.constant 0 : index
    %c640_133 = arith.constant 640 : index
    %156 = vector.load %arg12[%c0_131, %c0_132, %c640_133] : memref<3x16x1024xbf16, #tpu.memory_space<vmem>>, vector<1x16x256xbf16>
    %157 = vector.shape_cast %156 : vector<1x16x256xbf16> to vector<16x256xbf16>
    %158 = vector.shape_cast %155 : vector<16x256xbf16> to vector<1x16x256xbf16>
    tpu.vector_store %arg12[%c0_131, %c0_132, %c640_133], %158 {strides = array<i32>} : memref<3x16x1024xbf16, #tpu.memory_space<vmem>>, vector<1x16x256xbf16>,
    %159 = arith.truncf %151 : vector<16x256xf32> to vector<16x256xbf16>
    %c1_134 = arith.constant 1 : index
    %c0_135 = arith.constant 0 : index
    %c640_136 = arith.constant 640 : index
    %160 = vector.load %arg12[%c1_134, %c0_135, %c640_136] : memref<3x16x1024xbf16, #tpu.memory_space<vmem>>, vector<1x16x256xbf16>
    %161 = vector.shape_cast %160 : vector<1x16x256xbf16> to vector<16x256xbf16>
    %162 = vector.shape_cast %159 : vector<16x256xbf16> to vector<1x16x256xbf16>
    tpu.vector_store %arg12[%c1_134, %c0_135, %c640_136], %162 {strides = array<i32>} : memref<3x16x1024xbf16, #tpu.memory_space<vmem>>, vector<1x16x256xbf16>,
    %163 = vector.extract_strided_slice %29 {offsets = [2, 0], sizes = [1, 256], strides = [1, 1]} : vector<3x256xf32> to vector<1x256xf32>
    %164 = vector.broadcast %163 : vector<1x256xf32> to vector<16x256xf32>
    %165 = arith.mulf %151, %164 : vector<16x256xf32>
    %166 = arith.truncf %165 : vector<16x256xf32> to vector<16x256xbf16>
    %c2_137 = arith.constant 2 : index
    %c0_138 = arith.constant 0 : index
    %c640_139 = arith.constant 640 : index
    %167 = vector.load %arg12[%c2_137, %c0_138, %c640_139] : memref<3x16x1024xbf16, #tpu.memory_space<vmem>>, vector<1x16x256xbf16>
    %168 = vector.shape_cast %167 : vector<1x16x256xbf16> to vector<16x256xbf16>
    %169 = vector.shape_cast %166 : vector<16x256xbf16> to vector<1x16x256xbf16>
    tpu.vector_store %arg12[%c2_137, %c0_138, %c640_139], %169 {strides = array<i32>} : memref<3x16x1024xbf16, #tpu.memory_space<vmem>>, vector<1x16x256xbf16>,
    %c0_140 = arith.constant 0 : index
    %c0_141 = arith.constant 0 : index
    %c111_142 = arith.constant 111 : index
    %170 = vector.load %arg12[%c0_140, %c0_141, %c111_142] : memref<3x16x1024xbf16, #tpu.memory_space<vmem>>, vector<1x16x256xbf16>
    %171 = vector.shape_cast %170 : vector<1x16x256xbf16> to vector<16x256xbf16>
    %c0_143 = arith.constant 0 : index
    %c0_144 = arith.constant 0 : index
    %172 = vector.load %arg13[%c0_143, %c0_144] : memref<144x512xbf16, #tpu.memory_space<vmem>>, vector<16x256xbf16>
    tpu.vector_store %arg13[%c0_143, %c0_144], %171 {strides = array<i32>} : memref<144x512xbf16, #tpu.memory_space<vmem>>, vector<16x256xbf16>,
    %c0_145 = arith.constant 0 : index
    %c0_146 = arith.constant 0 : index
    %c623_147 = arith.constant 623 : index
    %173 = vector.load %arg12[%c0_145, %c0_146, %c623_147] : memref<3x16x1024xbf16, #tpu.memory_space<vmem>>, vector<1x16x256xbf16>
    %174 = vector.shape_cast %173 : vector<1x16x256xbf16> to vector<16x256xbf16>
    %c0_148 = arith.constant 0 : index
    %c256_149 = arith.constant 256 : index
    %175 = vector.load %arg13[%c0_148, %c256_149] : memref<144x512xbf16, #tpu.memory_space<vmem>>, vector<16x256xbf16>
    tpu.vector_store %arg13[%c0_148, %c256_149], %174 {strides = array<i32>} : memref<144x512xbf16, #tpu.memory_space<vmem>>, vector<16x256xbf16>,
    %c1_150 = arith.constant 1 : index
    %c0_151 = arith.constant 0 : index
    %c112_152 = arith.constant 112 : index
    %176 = vector.load %arg12[%c1_150, %c0_151, %c112_152] : memref<3x16x1024xbf16, #tpu.memory_space<vmem>>, vector<1x16x256xbf16>
    %177 = vector.shape_cast %176 : vector<1x16x256xbf16> to vector<16x256xbf16>
    %c16_153 = arith.constant 16 : index
    %c0_154 = arith.constant 0 : index
    %178 = vector.load %arg13[%c16_153, %c0_154] : memref<144x512xbf16, #tpu.memory_space<vmem>>, vector<16x256xbf16>
    tpu.vector_store %arg13[%c16_153, %c0_154], %177 {strides = array<i32>} : memref<144x512xbf16, #tpu.memory_space<vmem>>, vector<16x256xbf16>,
    %c1_155 = arith.constant 1 : index
    %c0_156 = arith.constant 0 : index
    %c624_157 = arith.constant 624 : index
    %179 = vector.load %arg12[%c1_155, %c0_156, %c624_157] : memref<3x16x1024xbf16, #tpu.memory_space<vmem>>, vector<1x16x256xbf16>
    %180 = vector.shape_cast %179 : vector<1x16x256xbf16> to vector<16x256xbf16>
    %c16_158 = arith.constant 16 : index
    %c256_159 = arith.constant 256 : index
    %181 = vector.load %arg13[%c16_158, %c256_159] : memref<144x512xbf16, #tpu.memory_space<vmem>>, vector<16x256xbf16>
    tpu.vector_store %arg13[%c16_158, %c256_159], %180 {strides = array<i32>} : memref<144x512xbf16, #tpu.memory_space<vmem>>, vector<16x256xbf16>,
    %c2_160 = arith.constant 2 : index
    %c0_161 = arith.constant 0 : index
    %c113_162 = arith.constant 113 : index
    %182 = vector.load %arg12[%c2_160, %c0_161, %c113_162] : memref<3x16x1024xbf16, #tpu.memory_space<vmem>>, vector<1x16x256xbf16>
    %183 = vector.shape_cast %182 : vector<1x16x256xbf16> to vector<16x256xbf16>
    %c32_163 = arith.constant 32 : index
    %c0_164 = arith.constant 0 : index
    %184 = vector.load %arg13[%c32_163, %c0_164] : memref<144x512xbf16, #tpu.memory_space<vmem>>, vector<16x256xbf16>
    tpu.vector_store %arg13[%c32_163, %c0_164], %183 {strides = array<i32>} : memref<144x512xbf16, #tpu.memory_space<vmem>>, vector<16x256xbf16>,
    %c2_165 = arith.constant 2 : index
    %c0_166 = arith.constant 0 : index
    %c625_167 = arith.constant 625 : index
    %185 = vector.load %arg12[%c2_165, %c0_166, %c625_167] : memref<3x16x1024xbf16, #tpu.memory_space<vmem>>, vector<1x16x256xbf16>
    %186 = vector.shape_cast %185 : vector<1x16x256xbf16> to vector<16x256xbf16>
    %c32_168 = arith.constant 32 : index
    %c256_169 = arith.constant 256 : index
    %187 = vector.load %arg13[%c32_168, %c256_169] : memref<144x512xbf16, #tpu.memory_space<vmem>>, vector<16x256xbf16>
    tpu.vector_store %arg13[%c32_168, %c256_169], %186 {strides = array<i32>} : memref<144x512xbf16, #tpu.memory_space<vmem>>, vector<16x256xbf16>,
    %c0_170 = arith.constant 0 : index
    %c0_171 = arith.constant 0 : index
    %c127_172 = arith.constant 127 : index
    %188 = vector.load %arg12[%c0_170, %c0_171, %c127_172] : memref<3x16x1024xbf16, #tpu.memory_space<vmem>>, vector<1x16x256xbf16>
    %189 = vector.shape_cast %188 : vector<1x16x256xbf16> to vector<16x256xbf16>
    %c48_173 = arith.constant 48 : index
    %c0_174 = arith.constant 0 : index
    %190 = vector.load %arg13[%c48_173, %c0_174] : memref<144x512xbf16, #tpu.memory_space<vmem>>, vector<16x256xbf16>
    tpu.vector_store %arg13[%c48_173, %c0_174], %189 {strides = array<i32>} : memref<144x512xbf16, #tpu.memory_space<vmem>>, vector<16x256xbf16>,
    %c0_175 = arith.constant 0 : index
    %c0_176 = arith.constant 0 : index
    %c639_177 = arith.constant 639 : index
    %191 = vector.load %arg12[%c0_175, %c0_176, %c639_177] : memref<3x16x1024xbf16, #tpu.memory_space<vmem>>, vector<1x16x256xbf16>
    %192 = vector.shape_cast %191 : vector<1x16x256xbf16> to vector<16x256xbf16>
    %c48_178 = arith.constant 48 : index
    %c256_179 = arith.constant 256 : index
    %193 = vector.load %arg13[%c48_178, %c256_179] : memref<144x512xbf16, #tpu.memory_space<vmem>>, vector<16x256xbf16>
    tpu.vector_store %arg13[%c48_178, %c256_179], %192 {strides = array<i32>} : memref<144x512xbf16, #tpu.memory_space<vmem>>, vector<16x256xbf16>,
    %c1_180 = arith.constant 1 : index
    %c0_181 = arith.constant 0 : index
    %c128_182 = arith.constant 128 : index
    %194 = vector.load %arg12[%c1_180, %c0_181, %c128_182] : memref<3x16x1024xbf16, #tpu.memory_space<vmem>>, vector<1x16x256xbf16>
    %195 = vector.shape_cast %194 : vector<1x16x256xbf16> to vector<16x256xbf16>
    %c64_183 = arith.constant 64 : index
    %c0_184 = arith.constant 0 : index
    %196 = vector.load %arg13[%c64_183, %c0_184] : memref<144x512xbf16, #tpu.memory_space<vmem>>, vector<16x256xbf16>
    tpu.vector_store %arg13[%c64_183, %c0_184], %195 {strides = array<i32>} : memref<144x512xbf16, #tpu.memory_space<vmem>>, vector<16x256xbf16>,
    %c1_185 = arith.constant 1 : index
    %c0_186 = arith.constant 0 : index
    %c640_187 = arith.constant 640 : index
    %197 = vector.load %arg12[%c1_185, %c0_186, %c640_187] : memref<3x16x1024xbf16, #tpu.memory_space<vmem>>, vector<1x16x256xbf16>
    %198 = vector.shape_cast %197 : vector<1x16x256xbf16> to vector<16x256xbf16>
    %c64_188 = arith.constant 64 : index
    %c256_189 = arith.constant 256 : index
    %199 = vector.load %arg13[%c64_188, %c256_189] : memref<144x512xbf16, #tpu.memory_space<vmem>>, vector<16x256xbf16>
    tpu.vector_store %arg13[%c64_188, %c256_189], %198 {strides = array<i32>} : memref<144x512xbf16, #tpu.memory_space<vmem>>, vector<16x256xbf16>,
    %c2_190 = arith.constant 2 : index
    %c0_191 = arith.constant 0 : index
    %c129_192 = arith.constant 129 : index
    %200 = vector.load %arg12[%c2_190, %c0_191, %c129_192] : memref<3x16x1024xbf16, #tpu.memory_space<vmem>>, vector<1x16x256xbf16>
    %201 = vector.shape_cast %200 : vector<1x16x256xbf16> to vector<16x256xbf16>
    %c80_193 = arith.constant 80 : index
    %c0_194 = arith.constant 0 : index
    %202 = vector.load %arg13[%c80_193, %c0_194] : memref<144x512xbf16, #tpu.memory_space<vmem>>, vector<16x256xbf16>
    tpu.vector_store %arg13[%c80_193, %c0_194], %201 {strides = array<i32>} : memref<144x512xbf16, #tpu.memory_space<vmem>>, vector<16x256xbf16>,
    %c2_195 = arith.constant 2 : index
    %c0_196 = arith.constant 0 : index
    %c641_197 = arith.constant 641 : index
    %203 = vector.load %arg12[%c2_195, %c0_196, %c641_197] : memref<3x16x1024xbf16, #tpu.memory_space<vmem>>, vector<1x16x256xbf16>
    %204 = vector.shape_cast %203 : vector<1x16x256xbf16> to vector<16x256xbf16>
    %c80_198 = arith.constant 80 : index
    %c256_199 = arith.constant 256 : index
    %205 = vector.load %arg13[%c80_198, %c256_199] : memref<144x512xbf16, #tpu.memory_space<vmem>>, vector<16x256xbf16>
    tpu.vector_store %arg13[%c80_198, %c256_199], %204 {strides = array<i32>} : memref<144x512xbf16, #tpu.memory_space<vmem>>, vector<16x256xbf16>,
    %c0_200 = arith.constant 0 : index
    %c0_201 = arith.constant 0 : index
    %c143_202 = arith.constant 143 : index
    %206 = vector.load %arg12[%c0_200, %c0_201, %c143_202] : memref<3x16x1024xbf16, #tpu.memory_space<vmem>>, vector<1x16x256xbf16>
    %207 = vector.shape_cast %206 : vector<1x16x256xbf16> to vector<16x256xbf16>
    %c96_203 = arith.constant 96 : index
    %c0_204 = arith.constant 0 : index
    %208 = vector.load %arg13[%c96_203, %c0_204] : memref<144x512xbf16, #tpu.memory_space<vmem>>, vector<16x256xbf16>
    tpu.vector_store %arg13[%c96_203, %c0_204], %207 {strides = array<i32>} : memref<144x512xbf16, #tpu.memory_space<vmem>>, vector<16x256xbf16>,
    %c0_205 = arith.constant 0 : index
    %c0_206 = arith.constant 0 : index
    %c655_207 = arith.constant 655 : index
    %209 = vector.load %arg12[%c0_205, %c0_206, %c655_207] : memref<3x16x1024xbf16, #tpu.memory_space<vmem>>, vector<1x16x256xbf16>
    %210 = vector.shape_cast %209 : vector<1x16x256xbf16> to vector<16x256xbf16>
    %c96_208 = arith.constant 96 : index
    %c256_209 = arith.constant 256 : index
    %211 = vector.load %arg13[%c96_208, %c256_209] : memref<144x512xbf16, #tpu.memory_space<vmem>>, vector<16x256xbf16>
    tpu.vector_store %arg13[%c96_208, %c256_209], %210 {strides = array<i32>} : memref<144x512xbf16, #tpu.memory_space<vmem>>, vector<16x256xbf16>,
    %c1_210 = arith.constant 1 : index
    %c0_211 = arith.constant 0 : index
    %c144_212 = arith.constant 144 : index
    %212 = vector.load %arg12[%c1_210, %c0_211, %c144_212] : memref<3x16x1024xbf16, #tpu.memory_space<vmem>>, vector<1x16x256xbf16>
    %213 = vector.shape_cast %212 : vector<1x16x256xbf16> to vector<16x256xbf16>
    %c112_213 = arith.constant 112 : index
    %c0_214 = arith.constant 0 : index
    %214 = vector.load %arg13[%c112_213, %c0_214] : memref<144x512xbf16, #tpu.memory_space<vmem>>, vector<16x256xbf16>
    tpu.vector_store %arg13[%c112_213, %c0_214], %213 {strides = array<i32>} : memref<144x512xbf16, #tpu.memory_space<vmem>>, vector<16x256xbf16>,
    %c1_215 = arith.constant 1 : index
    %c0_216 = arith.constant 0 : index
    %c656_217 = arith.constant 656 : index
    %215 = vector.load %arg12[%c1_215, %c0_216, %c656_217] : memref<3x16x1024xbf16, #tpu.memory_space<vmem>>, vector<1x16x256xbf16>
    %216 = vector.shape_cast %215 : vector<1x16x256xbf16> to vector<16x256xbf16>
    %c112_218 = arith.constant 112 : index
    %c256_219 = arith.constant 256 : index
    %217 = vector.load %arg13[%c112_218, %c256_219] : memref<144x512xbf16, #tpu.memory_space<vmem>>, vector<16x256xbf16>
    tpu.vector_store %arg13[%c112_218, %c256_219], %216 {strides = array<i32>} : memref<144x512xbf16, #tpu.memory_space<vmem>>, vector<16x256xbf16>,
    %c2_220 = arith.constant 2 : index
    %c0_221 = arith.constant 0 : index
    %c145_222 = arith.constant 145 : index
    %218 = vector.load %arg12[%c2_220, %c0_221, %c145_222] : memref<3x16x1024xbf16, #tpu.memory_space<vmem>>, vector<1x16x256xbf16>
    %219 = vector.shape_cast %218 : vector<1x16x256xbf16> to vector<16x256xbf16>
    %c128_223 = arith.constant 128 : index
    %c0_224 = arith.constant 0 : index
    %220 = vector.load %arg13[%c128_223, %c0_224] : memref<144x512xbf16, #tpu.memory_space<vmem>>, vector<16x256xbf16>
    tpu.vector_store %arg13[%c128_223, %c0_224], %219 {strides = array<i32>} : memref<144x512xbf16, #tpu.memory_space<vmem>>, vector<16x256xbf16>,
    %c2_225 = arith.constant 2 : index
    %c0_226 = arith.constant 0 : index
    %c657_227 = arith.constant 657 : index
    %221 = vector.load %arg12[%c2_225, %c0_226, %c657_227] : memref<3x16x1024xbf16, #tpu.memory_space<vmem>>, vector<1x16x256xbf16>
    %222 = vector.shape_cast %221 : vector<1x16x256xbf16> to vector<16x256xbf16>
    %c128_228 = arith.constant 128 : index
    %c256_229 = arith.constant 256 : index
    %223 = vector.load %arg13[%c128_228, %c256_229] : memref<144x512xbf16, #tpu.memory_space<vmem>>, vector<16x256xbf16>
    tpu.vector_store %arg13[%c128_228, %c256_229], %222 {strides = array<i32>} : memref<144x512xbf16, #tpu.memory_space<vmem>>, vector<16x256xbf16>,
    %c0_230 = arith.constant 0 : index
    %c0_231 = arith.constant 0 : index
    %224 = vector.load %arg5[%c0_230, %c0_231] : memref<16x144xbf16, #tpu.memory_space<vmem>>, vector<16x144xbf16>
    %c0_232 = arith.constant 0 : index
    %c0_233 = arith.constant 0 : index
    %225 = vector.load %arg13[%c0_232, %c0_233] : memref<144x512xbf16, #tpu.memory_space<vmem>>, vector<144x512xbf16>
    %cst_234 = arith.constant dense<0.000000e+00> : vector<16x512xf32>
    %226 = tpu.matmul %224, %225, %cst_234 {dimension_numbers = #tpu.dot_dimension_numbers<[1], [0], [0], [1], [0, 0, 1, 1], [], []>} : vector<16x144xbf16>, vector<144x512xbf16>, vector<16x512xf32> -> vector<16x512xf32>
    %c0_235 = arith.constant 0 : index
    %c0_236 = arith.constant 0 : index
    %227 = vector.load %arg6[%c0_235, %c0_236] : memref<16x1xf32, #tpu.memory_space<vmem>>, vector<16x1xf32>
    %228 = vector.broadcast %227 : vector<16x1xf32> to vector<16x512xf32>
    %229 = arith.addf %226, %228 : vector<16x512xf32>
    %230 = vector.extract_strided_slice %229 {offsets = [0, 0], sizes = [16, 256], strides = [1, 1]} : vector<16x512xf32> to vector<16x256xf32>
    %cst_237 = arith.constant dense<0.000000e+00> : vector<16xf32>
    %231 = vector.multi_reduction <add>, %230, %cst_237 [1] : vector<16x256xf32> to vector<16xf32>
    %232 = vector.shape_cast %231 : vector<16xf32> to vector<16x1xf32>
    %cst_238 = arith.constant 2.560000e+02 : f32
    %233 = vector.broadcast %cst_238 : f32 to vector<16x1xf32>
    %234 = arith.divf %232, %233 : vector<16x1xf32>
    %c0_239 = arith.constant 0 : index
    %c0_240 = arith.constant 0 : index
    %235 = vector.load %arg7[%c0_239, %c0_240] : memref<16x4xf32, #tpu.memory_space<vmem>>, vector<16x4xf32>
    %236 = vector.broadcast %234 : vector<16x1xf32> to vector<16x4xf32>
    %237 = arith.mulf %235, %236 : vector<16x4xf32>
    %cst_241 = arith.constant dense<0.000000e+00> : vector<4xf32>
    %238 = vector.multi_reduction <add>, %237, %cst_241 [0] : vector<16x4xf32> to vector<4xf32>
    %239 = vector.shape_cast %238 : vector<4xf32> to vector<1x4xf32>
    %c0_242 = arith.constant 0 : index
    %c0_243 = arith.constant 0 : index
    %240 = vector.load %arg8[%c0_242, %c0_243] : memref<1x4xf32, #tpu.memory_space<vmem>>, vector<1x4xf32>
    %241 = arith.addf %239, %240 : vector<1x4xf32>
    %cst_244 = arith.constant 0.000000e+00 : f32
    %242 = vector.broadcast %cst_244 : f32 to vector<1x4xf32>
    %243 = arith.maximumf %241, %242 : vector<1x4xf32>
    %c0_245 = arith.constant 0 : index
    %c0_246 = arith.constant 0 : index
    %244 = vector.load %arg9[%c0_245, %c0_246] : memref<16x4xf32, #tpu.memory_space<vmem>>, vector<16x4xf32>
    %245 = vector.broadcast %243 : vector<1x4xf32> to vector<16x4xf32>
    %246 = arith.mulf %244, %245 : vector<16x4xf32>
    %cst_247 = arith.constant dense<0.000000e+00> : vector<16xf32>
    %247 = vector.multi_reduction <add>, %246, %cst_247 [1] : vector<16x4xf32> to vector<16xf32>
    %248 = vector.shape_cast %247 : vector<16xf32> to vector<16x1xf32>
    %c0_248 = arith.constant 0 : index
    %c0_249 = arith.constant 0 : index
    %249 = vector.load %arg10[%c0_248, %c0_249] : memref<16x1xf32, #tpu.memory_space<vmem>>, vector<16x1xf32>
    %250 = arith.addf %248, %249 : vector<16x1xf32>
    %251 = arith.negf %250 : vector<16x1xf32>
    %252 = math.exp %251 : vector<16x1xf32>
    %cst_250 = arith.constant 1.000000e+00 : f32
    %253 = vector.broadcast %cst_250 : f32 to vector<16x1xf32>
    %254 = arith.addf %253, %252 : vector<16x1xf32>
    %255 = arith.divf %253, %254 : vector<16x1xf32>
    %256 = vector.broadcast %255 : vector<16x1xf32> to vector<16x256xf32>
    %257 = arith.mulf %230, %256 : vector<16x256xf32>
    %c0_251 = arith.constant 0 : index
    %c0_252 = arith.constant 0 : index
    %c0_253 = arith.constant 0 : index
    %258 = vector.load %arg1[%c0_251, %c0_252, %c0_253] : memref<2x16x256xf32, #tpu.memory_space<vmem>>, vector<1x16x256xf32>
    %259 = vector.shape_cast %258 : vector<1x16x256xf32> to vector<16x256xf32>
    %260 = arith.addf %257, %259 : vector<16x256xf32>
    %c0_254 = arith.constant 0 : index
    %c0_255 = arith.constant 0 : index
    %c0_256 = arith.constant 0 : index
    %261 = vector.load %arg11[%c0_254, %c0_255, %c0_256] : memref<2x16x256xf32, #tpu.memory_space<vmem>>, vector<1x16x256xf32>
    %262 = vector.shape_cast %261 : vector<1x16x256xf32> to vector<16x256xf32>
    %263 = vector.shape_cast %260 : vector<16x256xf32> to vector<1x16x256xf32>
    tpu.vector_store %arg11[%c0_254, %c0_255, %c0_256], %263 {strides = array<i32>} : memref<2x16x256xf32, #tpu.memory_space<vmem>>, vector<1x16x256xf32>,
    %264 = vector.extract_strided_slice %229 {offsets = [0, 256], sizes = [16, 256], strides = [1, 1]} : vector<16x512xf32> to vector<16x256xf32>
    %cst_257 = arith.constant dense<0.000000e+00> : vector<16xf32>
    %265 = vector.multi_reduction <add>, %264, %cst_257 [1] : vector<16x256xf32> to vector<16xf32>
    %266 = vector.shape_cast %265 : vector<16xf32> to vector<16x1xf32>
    %cst_258 = arith.constant 2.560000e+02 : f32
    %267 = vector.broadcast %cst_258 : f32 to vector<16x1xf32>
    %268 = arith.divf %266, %267 : vector<16x1xf32>
    %c0_259 = arith.constant 0 : index
    %c0_260 = arith.constant 0 : index
    %269 = vector.load %arg7[%c0_259, %c0_260] : memref<16x4xf32, #tpu.memory_space<vmem>>, vector<16x4xf32>
    %270 = vector.broadcast %268 : vector<16x1xf32> to vector<16x4xf32>
    %271 = arith.mulf %269, %270 : vector<16x4xf32>
    %cst_261 = arith.constant dense<0.000000e+00> : vector<4xf32>
    %272 = vector.multi_reduction <add>, %271, %cst_261 [0] : vector<16x4xf32> to vector<4xf32>
    %273 = vector.shape_cast %272 : vector<4xf32> to vector<1x4xf32>
    %c0_262 = arith.constant 0 : index
    %c0_263 = arith.constant 0 : index
    %274 = vector.load %arg8[%c0_262, %c0_263] : memref<1x4xf32, #tpu.memory_space<vmem>>, vector<1x4xf32>
    %275 = arith.addf %273, %274 : vector<1x4xf32>
    %cst_264 = arith.constant 0.000000e+00 : f32
    %276 = vector.broadcast %cst_264 : f32 to vector<1x4xf32>
    %277 = arith.maximumf %275, %276 : vector<1x4xf32>
    %c0_265 = arith.constant 0 : index
    %c0_266 = arith.constant 0 : index
    %278 = vector.load %arg9[%c0_265, %c0_266] : memref<16x4xf32, #tpu.memory_space<vmem>>, vector<16x4xf32>
    %279 = vector.broadcast %277 : vector<1x4xf32> to vector<16x4xf32>
    %280 = arith.mulf %278, %279 : vector<16x4xf32>
    %cst_267 = arith.constant dense<0.000000e+00> : vector<16xf32>
    %281 = vector.multi_reduction <add>, %280, %cst_267 [1] : vector<16x4xf32> to vector<16xf32>
    %282 = vector.shape_cast %281 : vector<16xf32> to vector<16x1xf32>
    %c0_268 = arith.constant 0 : index
    %c0_269 = arith.constant 0 : index
    %283 = vector.load %arg10[%c0_268, %c0_269] : memref<16x1xf32, #tpu.memory_space<vmem>>, vector<16x1xf32>
    %284 = arith.addf %282, %283 : vector<16x1xf32>
    %285 = arith.negf %284 : vector<16x1xf32>
    %286 = math.exp %285 : vector<16x1xf32>
    %cst_270 = arith.constant 1.000000e+00 : f32
    %287 = vector.broadcast %cst_270 : f32 to vector<16x1xf32>
    %288 = arith.addf %287, %286 : vector<16x1xf32>
    %289 = arith.divf %287, %288 : vector<16x1xf32>
    %290 = vector.broadcast %289 : vector<16x1xf32> to vector<16x256xf32>
    %291 = arith.mulf %264, %290 : vector<16x256xf32>
    %c1_271 = arith.constant 1 : index
    %c0_272 = arith.constant 0 : index
    %c0_273 = arith.constant 0 : index
    %292 = vector.load %arg1[%c1_271, %c0_272, %c0_273] : memref<2x16x256xf32, #tpu.memory_space<vmem>>, vector<1x16x256xf32>
    %293 = vector.shape_cast %292 : vector<1x16x256xf32> to vector<16x256xf32>
    %294 = arith.addf %291, %293 : vector<16x256xf32>
    %c1_274 = arith.constant 1 : index
    %c0_275 = arith.constant 0 : index
    %c0_276 = arith.constant 0 : index
    %295 = vector.load %arg11[%c1_274, %c0_275, %c0_276] : memref<2x16x256xf32, #tpu.memory_space<vmem>>, vector<1x16x256xf32>
    %296 = vector.shape_cast %295 : vector<1x16x256xf32> to vector<16x256xf32>
    %297 = vector.shape_cast %294 : vector<16x256xf32> to vector<1x16x256xf32>
    tpu.vector_store %arg11[%c1_274, %c0_275, %c0_276], %297 {strides = array<i32>} : memref<2x16x256xf32, #tpu.memory_space<vmem>>, vector<1x16x256xf32>,
    return
  }
  func.func @transform_0(%arg0: i32) -> (i32, i32, i32) {
    %c0_i32 = arith.constant 0 : i32
    %c0_i32_0 = arith.constant 0 : i32
    %c0_i32_1 = arith.constant 0 : i32
    return %arg0, %c0_i32, %c0_i32_0 : i32, i32, i32
  }
  func.func @transform_1(%arg0: i32) -> (i32, i32) {
    %c0_i32 = arith.constant 0 : i32
    %c0_i32_0 = arith.constant 0 : i32
    %c0_i32_1 = arith.constant 0 : i32
    return %c0_i32, %c0_i32_0 : i32, i32
  }
  func.func @transform_2(%arg0: i32) -> (i32, i32) {
    %c0_i32 = arith.constant 0 : i32
    %c0_i32_0 = arith.constant 0 : i32
    %c0_i32_1 = arith.constant 0 : i32
    return %c0_i32, %c0_i32_0 : i32, i32
  }
  func.func @transform_3(%arg0: i32) -> (i32, i32) {
    %c0_i32 = arith.constant 0 : i32
    %c0_i32_0 = arith.constant 0 : i32
    %c0_i32_1 = arith.constant 0 : i32
    return %c0_i32, %c0_i32_0 : i32, i32
  }
  func.func @transform_4(%arg0: i32) -> (i32, i32) {
    %c0_i32 = arith.constant 0 : i32
    %c0_i32_0 = arith.constant 0 : i32
    %c0_i32_1 = arith.constant 0 : i32
    return %c0_i32, %c0_i32_0 : i32, i32
  }
  func.func @transform_5(%arg0: i32) -> (i32, i32) {
    %c0_i32 = arith.constant 0 : i32
    %c0_i32_0 = arith.constant 0 : i32
    %c0_i32_1 = arith.constant 0 : i32
    return %c0_i32, %c0_i32_0 : i32, i32
  }
  func.func @transform_6(%arg0: i32) -> (i32, i32) {
    %c0_i32 = arith.constant 0 : i32
    %c0_i32_0 = arith.constant 0 : i32
    %c0_i32_1 = arith.constant 0 : i32
    return %c0_i32, %c0_i32_0 : i32, i32
  }
  func.func @transform_7(%arg0: i32) -> (i32, i32) {
    %c0_i32 = arith.constant 0 : i32
    %c0_i32_0 = arith.constant 0 : i32
    %c0_i32_1 = arith.constant 0 : i32
    return %c0_i32, %c0_i32_0 : i32, i32
  }
  func.func @transform_8(%arg0: i32) -> (i32, i32) {
    %c0_i32 = arith.constant 0 : i32
    %c0_i32_0 = arith.constant 0 : i32
    %c0_i32_1 = arith.constant 0 : i32
    return %c0_i32, %c0_i32_0 : i32, i32
  }
  func.func @transform_9(%arg0: i32) -> (i32, i32) {
    %c0_i32 = arith.constant 0 : i32
    %c0_i32_0 = arith.constant 0 : i32
    %c0_i32_1 = arith.constant 0 : i32
    return %c0_i32, %c0_i32_0 : i32, i32
  }
  func.func @transform_10(%arg0: i32) -> (i32, i32, i32) {
    %c0_i32 = arith.constant 0 : i32
    %c0_i32_0 = arith.constant 0 : i32
    %c0_i32_1 = arith.constant 0 : i32
    return %arg0, %c0_i32, %c0_i32_0 : i32, i32, i32
  }
}

</mosaic_0001>

<llo_original>
// kernel: tpu_custom_call.1
$region0: #{tpu_custom_call.1}
  #allocation0 [shape = 'u32[]', space=smem, size = 0x4, offset = 0x4, fixed_abs, tag = 'smem constant byte address 0x4 - core index']
  #allocation1 [shape = 'u32[144,128]{1,0:T(1,128)}', space=vmem, size = 0x12000, scoped, tag = 'internal scratch']
  #allocation2 [shape = 'bf16[3,16,1024]{2,1,0:T(8,128)(2,1)}', space=vmem, size = 0x18000, scoped, tag = 'scratch operand']
  #allocation3 [shape = 'bf16[144,512]{1,0:T(8,128)(2,1)}', space=vmem, size = 0x24000, scoped, tag = 'scratch operand']
  %s0 = inlined_call_operand.hbm [shape: f32[2,16,256], index: 0, kind: input, shape index: {}, may-alias: {0,10}]
  %s1 = inlined_call_operand.vmem [shape: f32[3,256], index: 1, kind: input, shape index: {}]
  %s2 = inlined_call_operand.vmem [shape: bf16[16,144], index: 2, kind: input, shape index: {}]
  %s3 = inlined_call_operand.vmem [shape: f32[16,1], index: 3, kind: input, shape index: {}]
  %s4 = inlined_call_operand.vmem [shape: bf16[16,144], index: 4, kind: input, shape index: {}]
  %s5 = inlined_call_operand.vmem [shape: f32[16,1], index: 5, kind: input, shape index: {}]
  %s6 = inlined_call_operand.vmem [shape: f32[16,4], index: 6, kind: input, shape index: {}]
  %s7 = inlined_call_operand.vmem [shape: f32[1,4], index: 7, kind: input, shape index: {}]
  %s8 = inlined_call_operand.vmem [shape: f32[16,4], index: 8, kind: input, shape index: {}]
  %s9 = inlined_call_operand.vmem [shape: f32[16,1], index: 9, kind: input, shape index: {}]
  %s10 = inlined_call_operand.hbm [shape: f32[2,16,256], index: 10, kind: output, shape index: {}, may-alias: {0,10}]
  %s11 = sld [smem:[#allocation0]]
  $region54: #{tpu_custom_call.1} parent=0
    _
  %s13 = ssub.s32 1, %s11
  %s14 = scalar_select 0, %s13, %s11
  $region1: #{tpu_custom_call.1} parent=0
    #allocation4 [shape = 'u8[32768]{0}', space=vmem, size = 0x8000, scoped, tag = 'input window, operand 0, single buffered']
    #allocation5 [shape = 's32[1]{0}', space=sflag, size = 0x4, scoped, tag = 'scoped memory for tpu_custom_call.1']
    #allocation6 [shape = 's32[1]{0}', space=sflag, size = 0x4, scoped, tag = 'scoped memory for tpu_custom_call.1']
    #allocation7 [shape = 'u8[32768]{0}', space=vmem, size = 0x8000, scoped, tag = 'output window, operand 0, single buffered']
    %15 = vsyncpa [#allocation5], 0
    %16 = vsyncpa [#allocation6], 0
    // Predicated region
    $region2: #{tpu_custom_call.1} parent=1 // pred_check
      _
    $region3: #{tpu_custom_call.1} parent=1 // pred_check_branch
      %18 = sbr.rel (0) target = $region5
    $region4: #{tpu_custom_call.1} parent=1 // pred_region
      %s20 = ssub.s32 1024, 1024
      %21 = vsyncadd [#allocation5], %s20
      %s22 = sshll.u32 [#allocation4], 4
      %s23 = int_to_ptr.vmem [resolvable:$true] %s22
      %28 = dma.hbm_to_vmem [thread:$0]  %s0, 1024, %s23, [#allocation5], 256, 256, 16
    $region5: #{tpu_custom_call.1} parent=1 // pred_fallthru
      _
    // Predicated region
    $region6: #{tpu_custom_call.1} parent=1 // pred_check
      _
    $region7: #{tpu_custom_call.1} parent=1 // pred_check_branch
      %30 = sbr.rel (0) target = $region9
    $region8: #{tpu_custom_call.1} parent=1 // pred_region
      _
    $region9: #{tpu_custom_call.1} parent=1 // pred_fallthru
      _
    // Predicated region
    $region10: #{tpu_custom_call.1} parent=1 // pred_check
      _
    $region11: #{tpu_custom_call.1} parent=1 // pred_check_branch
      %32 = sbr.rel (0) target = $region13
    $region12: #{tpu_custom_call.1} parent=1 // pred_region
      _
    $region13: #{tpu_custom_call.1} parent=1 // pred_fallthru
      _
    // Predicated region
    $region14: #{tpu_custom_call.1} parent=1 // pred_check
      _
    $region15: #{tpu_custom_call.1} parent=1 // pred_check_branch
      %34 = sbr.rel (0) target = $region17
    $region16: #{tpu_custom_call.1} parent=1 // pred_region
      _
    $region17: #{tpu_custom_call.1} parent=1 // pred_fallthru
      _
    // Predicated region
    $region18: #{tpu_custom_call.1} parent=1 // pred_check
      _
    $region19: #{tpu_custom_call.1} parent=1 // pred_check_branch
      %36 = sbr.rel (0) target = $region21
    $region20: #{tpu_custom_call.1} parent=1 // pred_region
      _
    $region21: #{tpu_custom_call.1} parent=1 // pred_fallthru
      _
    // Predicated region
    $region22: #{tpu_custom_call.1} parent=1 // pred_check
      _
    $region23: #{tpu_custom_call.1} parent=1 // pred_check_branch
      %38 = sbr.rel (0) target = $region25
    $region24: #{tpu_custom_call.1} parent=1 // pred_region
      _
    $region25: #{tpu_custom_call.1} parent=1 // pred_fallthru
      _
    // Predicated region
    $region26: #{tpu_custom_call.1} parent=1 // pred_check
      _
    $region27: #{tpu_custom_call.1} parent=1 // pred_check_branch
      %40 = sbr.rel (0) target = $region29
    $region28: #{tpu_custom_call.1} parent=1 // pred_region
      _
    $region29: #{tpu_custom_call.1} parent=1 // pred_fallthru
      _
    // Predicated region
    $region30: #{tpu_custom_call.1} parent=1 // pred_check
      _
    $region31: #{tpu_custom_call.1} parent=1 // pred_check_branch
      %42 = sbr.rel (0) target = $region33
    $region32: #{tpu_custom_call.1} parent=1 // pred_region
      _
    $region33: #{tpu_custom_call.1} parent=1 // pred_fallthru
      _
    // Predicated region
    $region34: #{tpu_custom_call.1} parent=1 // pred_check
      _
    $region35: #{tpu_custom_call.1} parent=1 // pred_check_branch
      %44 = sbr.rel (0) target = $region37
    $region36: #{tpu_custom_call.1} parent=1 // pred_region
      _
    $region37: #{tpu_custom_call.1} parent=1 // pred_fallthru
      _
    // Predicated region
    $region38: #{tpu_custom_call.1} parent=1 // pred_check
      _
    $region39: #{tpu_custom_call.1} parent=1 // pred_check_branch
      %46 = sbr.rel (0) target = $region41
    $region40: #{tpu_custom_call.1} parent=1 // pred_region
      _
    $region41: #{tpu_custom_call.1} parent=1 // pred_fallthru
      _
    // Predicated region
    $region42: #{tpu_custom_call.1} parent=1 // pred_check
      _
    $region43: #{tpu_custom_call.1} parent=1 // pred_check_branch
      %48 = sbr.rel (0) target = $region45
    $region44: #{tpu_custom_call.1} parent=1 // pred_region
      %49 = dma.done [#allocation5], 1024
    $region45: #{tpu_custom_call.1} parent=1 // pred_fallthru
      _
    %51 = vst [vmem:[#allocation2] sm:$0xf] 0
    %52 = vst [vmem:[#allocation2 + $0x20] sm:$0xf] 0
    %53 = vst [vmem:[#allocation2 + $0xc] sm:$0xff] 0
    %54 = vst [vmem:[#allocation2 + $0x2c] sm:$0xff] 0
    %55 = vst [vmem:[#allocation2 + $0x1c] sm:$0xf] 0
    %56 = vst [vmem:[#allocation2 + $0x3c] sm:$0xf] 0
    %s57 = scalar_lea.vmem [#allocation2], 64
    %58 = vst [vmem:[%s57] sm:$0xf] 0
    %59 = vst [vmem:[%s57 + $0x20] sm:$0xf] 0
    %60 = vst [vmem:[%s57 + $0xc] sm:$0xff] 0
    %61 = vst [vmem:[%s57 + $0x2c] sm:$0xff] 0
    %62 = vst [vmem:[%s57 + $0x1c] sm:$0xf] 0
    %63 = vst [vmem:[%s57 + $0x3c] sm:$0xf] 0
    %s64 = scalar_lea.vmem [#allocation2], 128
    %65 = vst [vmem:[%s64] sm:$0xf] 0
    %66 = vst [vmem:[%s64 + $0x20] sm:$0xf] 0
    %67 = vst [vmem:[%s64 + $0xc] sm:$0xff] 0
    %68 = vst [vmem:[%s64 + $0x2c] sm:$0xff] 0
    %69 = vst [vmem:[%s64 + $0x1c] sm:$0xf] 0
    %70 = vst [vmem:[%s64 + $0x3c] sm:$0xf] 0
    %v71 = vld [vmem:[%s1] sm:$0x77]
    %v72 = vld [vmem:[#allocation4] sm:$0xff]
    %v73 = vld [vmem:[#allocation4 + $0x8] sm:$0xff]
    %v74 = vld [vmem:[#allocation4 + $0x10] sm:$0xff]
    %v75 = vld [vmem:[#allocation4 + $0x18] sm:$0xff]
    %v77 = vlaneseq
    %v78 = vshrl.u32 %v77, 7
    %v79 = vsub.s32 0, %v78
    %v80 = vrot.slane %v71, %v79
    %v81 = vlaneseq
    %v82 = vshrl.u32 %v81, 7
    %v83 = vsub.s32 4, %v82
    %v84 = vrot.slane %v71, %v83
    %v87 = vlaneseq
    %v88 = vshrl.u32 %v87, 7
    %v89 = vsub.s32 0, %v88
    %v90 = vrot.slane %v80, %v89
    %v91 = vlaneseq
    %v92 = vshrl.u32 %v91, 7
    %v93 = vsub.s32 0, %v92
    %v94 = vrot.slane %v84, %v93
    %v95 = vmul.f32 %v72, %v90
    %v96 = vmul.f32 %v73, %v94
    %v97 = vmul.f32 %v74, %v90
    %v98 = vmul.f32 %v75, %v94
    %v99 = vpack.c.bf16 %v97, %v95
    %v100 = vpack.c.bf16 %v98, %v96
    %v103 = vunpack.c.l.b16 %v99
    %v104 = vunpack.c.l.b16 %v100
    %v105 = vunpack.c.h.b16 %v99
    %v106 = vunpack.c.h.b16 %v100
    %v107 = vpack.c.b16 %v104, %v103
    %v108 = vpack.c.b16 %v106, %v105
    %111 = vst [vmem:[#allocation2 + $0x4] sm:$0xff] %v107
    %112 = vst [vmem:[#allocation2 + $0x24] sm:$0xff] %v108
    %v113 = vpack.c.bf16 %v74, %v72
    %v114 = vpack.c.bf16 %v75, %v73
    %v117 = vunpack.c.l.b16 %v113
    %v118 = vunpack.c.l.b16 %v114
    %v119 = vunpack.c.h.b16 %v113
    %v120 = vunpack.c.h.b16 %v114
    %v121 = vpack.c.b16 %v118, %v117
    %v122 = vpack.c.b16 %v120, %v119
    %125 = vst [vmem:[%s57 + $0x4] sm:$0xff] %v121
    %126 = vst [vmem:[%s57 + $0x24] sm:$0xff] %v122
    %v127 = vlaneseq
    %v128 = vshrl.u32 %v127, 7
    %v129 = vsub.s32 2, %v128
    %v130 = vrot.slane %v71, %v129
    %v131 = vlaneseq
    %v132 = vshrl.u32 %v131, 7
    %v133 = vsub.s32 6, %v132
    %v134 = vrot.slane %v71, %v133
    %v137 = vlaneseq
    %v138 = vshrl.u32 %v137, 7
    %v139 = vsub.s32 2, %v138
    %v140 = vrot.slane %v130, %v139
    %v141 = vlaneseq
    %v142 = vshrl.u32 %v141, 7
    %v143 = vsub.s32 2, %v142
    %v144 = vrot.slane %v134, %v143
    %v145 = vmul.f32 %v72, %v140
    %v146 = vmul.f32 %v73, %v144
    %v147 = vmul.f32 %v74, %v140
    %v148 = vmul.f32 %v75, %v144
    %v149 = vpack.c.bf16 %v147, %v145
    %v150 = vpack.c.bf16 %v148, %v146
    %v153 = vunpack.c.l.b16 %v149
    %v154 = vunpack.c.l.b16 %v150
    %v155 = vunpack.c.h.b16 %v149
    %v156 = vunpack.c.h.b16 %v150
    %v157 = vpack.c.b16 %v154, %v153
    %v158 = vpack.c.b16 %v156, %v155
    %161 = vst [vmem:[%s64 + $0x4] sm:$0xff] %v157
    %162 = vst [vmem:[%s64 + $0x24] sm:$0xff] %v158
    %s163 = scalar_lea.vmem [#allocation4], 32
    %v164 = vld [vmem:[%s163] sm:$0xff]
    %v165 = vld [vmem:[%s163 + $0x8] sm:$0xff]
    %v166 = vld [vmem:[%s163 + $0x10] sm:$0xff]
    %v167 = vld [vmem:[%s163 + $0x18] sm:$0xff]
    %v168 = vmul.f32 %v164, %v90
    %v169 = vmul.f32 %v165, %v94
    %v170 = vmul.f32 %v166, %v90
    %v171 = vmul.f32 %v167, %v94
    %v172 = vpack.c.bf16 %v170, %v168
    %v173 = vpack.c.bf16 %v171, %v169
    %v176 = vunpack.c.l.b16 %v172
    %v177 = vunpack.c.l.b16 %v173
    %v178 = vunpack.c.h.b16 %v172
    %v179 = vunpack.c.h.b16 %v173
    %v180 = vpack.c.b16 %v177, %v176
    %v181 = vpack.c.b16 %v179, %v178
    %184 = vst [vmem:[#allocation2 + $0x14] sm:$0xff] %v180
    %185 = vst [vmem:[#allocation2 + $0x34] sm:$0xff] %v181
    %v186 = vpack.c.bf16 %v166, %v164
    %v187 = vpack.c.bf16 %v167, %v165
    %v190 = vunpack.c.l.b16 %v186
    %v191 = vunpack.c.l.b16 %v187
    %v192 = vunpack.c.h.b16 %v186
    %v193 = vunpack.c.h.b16 %v187
    %v194 = vpack.c.b16 %v191, %v190
    %v195 = vpack.c.b16 %v193, %v192
    %198 = vst [vmem:[%s57 + $0x14] sm:$0xff] %v194
    %199 = vst [vmem:[%s57 + $0x34] sm:$0xff] %v195
    %v200 = vmul.f32 %v164, %v140
    %v201 = vmul.f32 %v165, %v144
    %v202 = vmul.f32 %v166, %v140
    %v203 = vmul.f32 %v167, %v144
    %v204 = vpack.c.bf16 %v202, %v200
    %v205 = vpack.c.bf16 %v203, %v201
    %v208 = vunpack.c.l.b16 %v204
    %v209 = vunpack.c.l.b16 %v205
    %v210 = vunpack.c.h.b16 %v204
    %v211 = vunpack.c.h.b16 %v205
    %v212 = vpack.c.b16 %v209, %v208
    %v213 = vpack.c.b16 %v211, %v210
    %216 = vst [vmem:[%s64 + $0x14] sm:$0xff] %v212
    %217 = vst [vmem:[%s64 + $0x34] sm:$0xff] %v213
    %v218 = vld [vmem:[#allocation2] sm:$0xff]
    %v219 = vld [vmem:[#allocation2 + $0x8] sm:$0xf]
    %v220 = vld [vmem:[#allocation2 + $0x20] sm:$0xff]
    %v221 = vld [vmem:[#allocation2 + $0x28] sm:$0xf]
    %226 = vrot.lane.b32.xlu0 %v218, 17
    %v227 = vpop.permute.xlu0 %226
    %228 = vrot.lane.b32.xlu0 %v219, 17
    %v229 = vpop.permute.xlu0 %228
    %230 = vrot.lane.b32.xlu0 %v220, 17
    %v231 = vpop.permute.xlu0 %230
    %232 = vrot.lane.b32.xlu0 %v221, 17
    %v233 = vpop.permute.xlu0 %232
    %v234 = vrot.slane %v227, 4
    %v235 = vrot.slane %v229, 4
    %v236 = vrot.slane %v231, 4
    %v237 = vrot.slane %v233, 4
    %vm238 = vcmask 1043456
    %v239 = vsel %vm238, %v234, %v235
    %vm240 = vcmask 138240
    %v241 = vsel %vm240, %v227, %v239
    %v242 = vsel %vm238, %v236, %v237
    %v243 = vsel %vm240, %v231, %v242
    %246 = vst [vmem:[#allocation3] sm:$0xff] %v241
    %247 = vst [vmem:[#allocation3 + $0x10] sm:$0xff] %v243
    %v248 = vld [vmem:[#allocation2 + $0x10] sm:$0xff]
    %v249 = vld [vmem:[#allocation2 + $0x18] sm:$0xf]
    %v250 = vld [vmem:[#allocation2 + $0x30] sm:$0xff]
    %v251 = vld [vmem:[#allocation2 + $0x38] sm:$0xf]
    %256 = vrot.lane.b32.xlu0 %v248, 17
    %v257 = vpop.permute.xlu0 %256
    %258 = vrot.lane.b32.xlu0 %v249, 17
    %v259 = vpop.permute.xlu0 %258
    %260 = vrot.lane.b32.xlu0 %v250, 17
    %v261 = vpop.permute.xlu0 %260
    %262 = vrot.lane.b32.xlu0 %v251, 17
    %v263 = vpop.permute.xlu0 %262
    %v264 = vrot.slane %v257, 4
    %v265 = vrot.slane %v259, 4
    %v266 = vrot.slane %v261, 4
    %v267 = vrot.slane %v263, 4
    %v268 = vsel %vm238, %v264, %v265
    %v269 = vsel %vm240, %v257, %v268
    %v270 = vsel %vm238, %v266, %v267
    %v271 = vsel %vm240, %v261, %v270
    %274 = vst [vmem:[#allocation3 + $0x8] sm:$0xff] %v269
    %275 = vst [vmem:[#allocation3 + $0x18] sm:$0xff] %v271
    %v276 = vld [vmem:[%s57] sm:$0xff]
    %v277 = vld [vmem:[%s57 + $0x8] sm:$0xf]
    %v278 = vld [vmem:[%s57 + $0x20] sm:$0xff]
    %v279 = vld [vmem:[%s57 + $0x28] sm:$0xf]
    %284 = vrot.lane.b32.xlu0 %v276, 16
    %v285 = vpop.permute.xlu0 %284
    %286 = vrot.lane.b32.xlu0 %v277, 16
    %v287 = vpop.permute.xlu0 %286
    %288 = vrot.lane.b32.xlu0 %v278, 16
    %v289 = vpop.permute.xlu0 %288
    %290 = vrot.lane.b32.xlu0 %v279, 16
    %v291 = vpop.permute.xlu0 %290
    %v292 = vrot.slane %v285, 4
    %v293 = vrot.slane %v287, 4
    %v294 = vrot.slane %v289, 4
    %v295 = vrot.slane %v291, 4
    %v296 = vsel %vm238, %v292, %v293
    %vm297 = vcmask 130048
    %v298 = vsel %vm297, %v285, %v296
    %v299 = vsel %vm238, %v294, %v295
    %v300 = vsel %vm297, %v289, %v299
    %303 = vst [vmem:[#allocation3 + $0x20] sm:$0xff] %v298
    %304 = vst [vmem:[#allocation3 + $0x30] sm:$0xff] %v300
    %v305 = vld [vmem:[%s57 + $0x10] sm:$0xff]
    %v306 = vld [vmem:[%s57 + $0x18] sm:$0xf]
    %v307 = vld [vmem:[%s57 + $0x30] sm:$0xff]
    %v308 = vld [vmem:[%s57 + $0x38] sm:$0xf]
    %313 = vrot.lane.b32.xlu0 %v305, 16
    %v314 = vpop.permute.xlu0 %313
    %315 = vrot.lane.b32.xlu0 %v306, 16
    %v316 = vpop.permute.xlu0 %315
    %317 = vrot.lane.b32.xlu0 %v307, 16
    %v318 = vpop.permute.xlu0 %317
    %319 = vrot.lane.b32.xlu0 %v308, 16
    %v320 = vpop.permute.xlu0 %319
    %v321 = vrot.slane %v314, 4
    %v322 = vrot.slane %v316, 4
    %v323 = vrot.slane %v318, 4
    %v324 = vrot.slane %v320, 4
    %v325 = vsel %vm238, %v321, %v322
    %v326 = vsel %vm297, %v314, %v325
    %v327 = vsel %vm238, %v323, %v324
    %v328 = vsel %vm297, %v318, %v327
    %331 = vst [vmem:[#allocation3 + $0x28] sm:$0xff] %v326
    %332 = vst [vmem:[#allocation3 + $0x38] sm:$0xff] %v328
    %v333 = vld [vmem:[%s64] sm:$0xff]
    %v334 = vld [vmem:[%s64 + $0x8] sm:$0xf]
    %v335 = vld [vmem:[%s64 + $0x20] sm:$0xff]
    %v336 = vld [vmem:[%s64 + $0x28] sm:$0xf]
    %341 = vrot.lane.b32.xlu0 %v333, 15
    %v342 = vpop.permute.xlu0 %341
    %343 = vrot.lane.b32.xlu0 %v334, 15
    %v344 = vpop.permute.xlu0 %343
    %345 = vrot.lane.b32.xlu0 %v335, 15
    %v346 = vpop.permute.xlu0 %345
    %347 = vrot.lane.b32.xlu0 %v336, 15
    %v348 = vpop.permute.xlu0 %347
    %v349 = vrot.slane %v342, 4
    %v350 = vrot.slane %v344, 4
    %v351 = vrot.slane %v346, 4
    %v352 = vrot.slane %v348, 4
    %v353 = vsel %vm238, %v349, %v350
    %vm354 = vcmask 121856
    %v355 = vsel %vm354, %v342, %v353
    %v356 = vsel %vm238, %v351, %v352
    %v357 = vsel %vm354, %v346, %v356
    %360 = vst [vmem:[#allocation3 + $0x40] sm:$0xff] %v355
    %361 = vst [vmem:[#allocation3 + $0x50] sm:$0xff] %v357
    %v362 = vld [vmem:[%s64 + $0x10] sm:$0xff]
    %v363 = vld [vmem:[%s64 + $0x18] sm:$0xf]
    %v364 = vld [vmem:[%s64 + $0x30] sm:$0xff]
    %v365 = vld [vmem:[%s64 + $0x38] sm:$0xf]
    %370 = vrot.lane.b32.xlu0 %v362, 15
    %v371 = vpop.permute.xlu0 %370
    %372 = vrot.lane.b32.xlu0 %v363, 15
    %v373 = vpop.permute.xlu0 %372
    %374 = vrot.lane.b32.xlu0 %v364, 15
    %v375 = vpop.permute.xlu0 %374
    %376 = vrot.lane.b32.xlu0 %v365, 15
    %v377 = vpop.permute.xlu0 %376
    %v378 = vrot.slane %v371, 4
    %v379 = vrot.slane %v373, 4
    %v380 = vrot.slane %v375, 4
    %v381 = vrot.slane %v377, 4
    %v382 = vsel %vm238, %v378, %v379
    %v383 = vsel %vm354, %v371, %v382
    %v384 = vsel %vm238, %v380, %v381
    %v385 = vsel %vm354, %v375, %v384
    %388 = vst [vmem:[#allocation3 + $0x48] sm:$0xff] %v383
    %389 = vst [vmem:[#allocation3 + $0x58] sm:$0xff] %v385
    %v390 = vld [vmem:[#allocation2] sm:$0xff]
    %v391 = vld [vmem:[#allocation2 + $0x8] sm:$0xf]
    %v392 = vld [vmem:[#allocation2 + $0x20] sm:$0xff]
    %v393 = vld [vmem:[#allocation2 + $0x28] sm:$0xf]
    %398 = vrot.lane.b32.xlu0 %v390, 1
    %v399 = vpop.permute.xlu0 %398
    %400 = vrot.lane.b32.xlu0 %v391, 1
    %v401 = vpop.permute.xlu0 %400
    %402 = vrot.lane.b32.xlu0 %v392, 1
    %v403 = vpop.permute.xlu0 %402
    %404 = vrot.lane.b32.xlu0 %v393, 1
    %v405 = vpop.permute.xlu0 %404
    %v406 = vrot.slane %v399, 4
    %v407 = vrot.slane %v401, 4
    %v408 = vrot.slane %v403, 4
    %v409 = vrot.slane %v405, 4
    %v410 = vsel %vm238, %v406, %v407
    %vm411 = vcmask 7168
    %v412 = vsel %vm411, %v399, %v410
    %v413 = vsel %vm238, %v408, %v409
    %v414 = vsel %vm411, %v403, %v413
    %417 = vst [vmem:[#allocation3 + $0x60] sm:$0xff] %v412
    %418 = vst [vmem:[#allocation3 + $0x70] sm:$0xff] %v414
    %v419 = vld [vmem:[#allocation2 + $0x10] sm:$0xff]
    %v420 = vld [vmem:[#allocation2 + $0x18] sm:$0xf]
    %v421 = vld [vmem:[#allocation2 + $0x30] sm:$0xff]
    %v422 = vld [vmem:[#allocation2 + $0x38] sm:$0xf]
    %427 = vrot.lane.b32.xlu0 %v419, 1
    %v428 = vpop.permute.xlu0 %427
    %429 = vrot.lane.b32.xlu0 %v420, 1
    %v430 = vpop.permute.xlu0 %429
    %431 = vrot.lane.b32.xlu0 %v421, 1
    %v432 = vpop.permute.xlu0 %431
    %433 = vrot.lane.b32.xlu0 %v422, 1
    %v434 = vpop.permute.xlu0 %433
    %v435 = vrot.slane %v428, 4
    %v436 = vrot.slane %v430, 4
    %v437 = vrot.slane %v432, 4
    %v438 = vrot.slane %v434, 4
    %v439 = vsel %vm238, %v435, %v436
    %v440 = vsel %vm411, %v428, %v439
    %v441 = vsel %vm238, %v437, %v438
    %v442 = vsel %vm411, %v432, %v441
    %445 = vst [vmem:[#allocation3 + $0x68] sm:$0xff] %v440
    %446 = vst [vmem:[#allocation3 + $0x78] sm:$0xff] %v442
    %v447 = vld [vmem:[%s57 + $0x4] sm:$0xff]
    %v448 = vld [vmem:[%s57 + $0x24] sm:$0xff]
    %449 = vst [vmem:[#allocation3 + $0x80] sm:$0xff] %v447
    %450 = vst [vmem:[#allocation3 + $0x90] sm:$0xff] %v448
    %v451 = vld [vmem:[%s57 + $0x14] sm:$0xff]
    %v452 = vld [vmem:[%s57 + $0x34] sm:$0xff]
    %453 = vst [vmem:[#allocation3 + $0x88] sm:$0xff] %v451
    %454 = vst [vmem:[#allocation3 + $0x98] sm:$0xff] %v452
    %v455 = vld [vmem:[%s64 + $0x4] sm:$0xff]
    %v456 = vld [vmem:[%s64 + $0xc] sm:$0xf]
    %v457 = vld [vmem:[%s64 + $0x24] sm:$0xff]
    %v458 = vld [vmem:[%s64 + $0x2c] sm:$0xf]
    %463 = vrot.lane.b32.xlu0 %v455, 127
    %v464 = vpop.permute.xlu0 %463
    %465 = vrot.lane.b32.xlu0 %v456, 127
    %v466 = vpop.permute.xlu0 %465
    %467 = vrot.lane.b32.xlu0 %v457, 127
    %v468 = vpop.permute.xlu0 %467
    %469 = vrot.lane.b32.xlu0 %v458, 127
    %v470 = vpop.permute.xlu0 %469
    %v471 = vrot.slane %v464, 4
    %v472 = vrot.slane %v466, 4
    %v473 = vrot.slane %v468, 4
    %v474 = vrot.slane %v470, 4
    %v475 = vsel %vm238, %v471, %v472
    %vm476 = vcmask 1039360
    %v477 = vsel %vm476, %v464, %v475
    %v478 = vsel %vm238, %v473, %v474
    %v479 = vsel %vm476, %v468, %v478
    %482 = vst [vmem:[#allocation3 + $0xa0] sm:$0xff] %v477
    %483 = vst [vmem:[#allocation3 + $0xb0] sm:$0xff] %v479
    %v484 = vld [vmem:[%s64 + $0x14] sm:$0xff]
    %v485 = vld [vmem:[%s64 + $0x1c] sm:$0xf]
    %v486 = vld [vmem:[%s64 + $0x34] sm:$0xff]
    %v487 = vld [vmem:[%s64 + $0x3c] sm:$0xf]
    %492 = vrot.lane.b32.xlu0 %v484, 127
    %v493 = vpop.permute.xlu0 %492
    %494 = vrot.lane.b32.xlu0 %v485, 127
    %v495 = vpop.permute.xlu0 %494
    %496 = vrot.lane.b32.xlu0 %v486, 127
    %v497 = vpop.permute.xlu0 %496
    %498 = vrot.lane.b32.xlu0 %v487, 127
    %v499 = vpop.permute.xlu0 %498
    %v500 = vrot.slane %v493, 4
    %v501 = vrot.slane %v495, 4
    %v502 = vrot.slane %v497, 4
    %v503 = vrot.slane %v499, 4
    %v504 = vsel %vm238, %v500, %v501
    %v505 = vsel %vm476, %v493, %v504
    %v506 = vsel %vm238, %v502, %v503
    %v507 = vsel %vm476, %v497, %v506
    %510 = vst [vmem:[#allocation3 + $0xa8] sm:$0xff] %v505
    %511 = vst [vmem:[#allocation3 + $0xb8] sm:$0xff] %v507
    %v512 = vld [vmem:[#allocation2 + $0x4] sm:$0xff]
    %v513 = vld [vmem:[#allocation2 + $0xc] sm:$0xf]
    %v514 = vld [vmem:[#allocation2 + $0x24] sm:$0xff]
    %v515 = vld [vmem:[#allocation2 + $0x2c] sm:$0xf]
    %520 = vrot.lane.b32.xlu0 %v512, 113
    %v521 = vpop.permute.xlu0 %520
    %522 = vrot.lane.b32.xlu0 %v513, 113
    %v523 = vpop.permute.xlu0 %522
    %524 = vrot.lane.b32.xlu0 %v514, 113
    %v525 = vpop.permute.xlu0 %524
    %526 = vrot.lane.b32.xlu0 %v515, 113
    %v527 = vpop.permute.xlu0 %526
    %v528 = vrot.slane %v521, 4
    %v529 = vrot.slane %v523, 4
    %v530 = vrot.slane %v525, 4
    %v531 = vrot.slane %v527, 4
    %v532 = vsel %vm238, %v528, %v529
    %vm533 = vcmask 924672
    %v534 = vsel %vm533, %v521, %v532
    %v535 = vsel %vm238, %v530, %v531
    %v536 = vsel %vm533, %v525, %v535
    %539 = vst [vmem:[#allocation3 + $0xc0] sm:$0xff] %v534
    %540 = vst [vmem:[#allocation3 + $0xd0] sm:$0xff] %v536
    %v541 = vld [vmem:[#allocation2 + $0x14] sm:$0xff]
    %v542 = vld [vmem:[#allocation2 + $0x1c] sm:$0xf]
    %v543 = vld [vmem:[#allocation2 + $0x34] sm:$0xff]
    %v544 = vld [vmem:[#allocation2 + $0x3c] sm:$0xf]
    %549 = vrot.lane.b32.xlu0 %v541, 113
    %v550 = vpop.permute.xlu0 %549
    %551 = vrot.lane.b32.xlu0 %v542, 113
    %v552 = vpop.permute.xlu0 %551
    %553 = vrot.lane.b32.xlu0 %v543, 113
    %v554 = vpop.permute.xlu0 %553
    %555 = vrot.lane.b32.xlu0 %v544, 113
    %v556 = vpop.permute.xlu0 %555
    %v557 = vrot.slane %v550, 4
    %v558 = vrot.slane %v552, 4
    %v559 = vrot.slane %v554, 4
    %v560 = vrot.slane %v556, 4
    %v561 = vsel %vm238, %v557, %v558
    %v562 = vsel %vm533, %v550, %v561
    %v563 = vsel %vm238, %v559, %v560
    %v564 = vsel %vm533, %v554, %v563
    %567 = vst [vmem:[#allocation3 + $0xc8] sm:$0xff] %v562
    %568 = vst [vmem:[#allocation3 + $0xd8] sm:$0xff] %v564
    %v569 = vld [vmem:[%s57 + $0x4] sm:$0xff]
    %v570 = vld [vmem:[%s57 + $0xc] sm:$0xf]
    %v571 = vld [vmem:[%s57 + $0x24] sm:$0xff]
    %v572 = vld [vmem:[%s57 + $0x2c] sm:$0xf]
    %577 = vrot.lane.b32.xlu0 %v569, 112
    %v578 = vpop.permute.xlu0 %577
    %579 = vrot.lane.b32.xlu0 %v570, 112
    %v580 = vpop.permute.xlu0 %579
    %581 = vrot.lane.b32.xlu0 %v571, 112
    %v582 = vpop.permute.xlu0 %581
    %583 = vrot.lane.b32.xlu0 %v572, 112
    %v584 = vpop.permute.xlu0 %583
    %v585 = vrot.slane %v578, 4
    %v586 = vrot.slane %v580, 4
    %v587 = vrot.slane %v582, 4
    %v588 = vrot.slane %v584, 4
    %v589 = vsel %vm238, %v585, %v586
    %vm590 = vcmask 916480
    %v591 = vsel %vm590, %v578, %v589
    %v592 = vsel %vm238, %v587, %v588
    %v593 = vsel %vm590, %v582, %v592
    %596 = vst [vmem:[#allocation3 + $0xe0] sm:$0xff] %v591
    %597 = vst [vmem:[#allocation3 + $0xf0] sm:$0xff] %v593
    %v598 = vld [vmem:[%s57 + $0x14] sm:$0xff]
    %v599 = vld [vmem:[%s57 + $0x1c] sm:$0xf]
    %v600 = vld [vmem:[%s57 + $0x34] sm:$0xff]
    %v601 = vld [vmem:[%s57 + $0x3c] sm:$0xf]
    %606 = vrot.lane.b32.xlu0 %v598, 112
    %v607 = vpop.permute.xlu0 %606
    %608 = vrot.lane.b32.xlu0 %v599, 112
    %v609 = vpop.permute.xlu0 %608
    %610 = vrot.lane.b32.xlu0 %v600, 112
    %v611 = vpop.permute.xlu0 %610
    %612 = vrot.lane.b32.xlu0 %v601, 112
    %v613 = vpop.permute.xlu0 %612
    %v614 = vrot.slane %v607, 4
    %v615 = vrot.slane %v609, 4
    %v616 = vrot.slane %v611, 4
    %v617 = vrot.slane %v613, 4
    %v618 = vsel %vm238, %v614, %v615
    %v619 = vsel %vm590, %v607, %v618
    %v620 = vsel %vm238, %v616, %v617
    %v621 = vsel %vm590, %v611, %v620
    %624 = vst [vmem:[#allocation3 + $0xe8] sm:$0xff] %v619
    %625 = vst [vmem:[#allocation3 + $0xf8] sm:$0xff] %v621
    %v626 = vld [vmem:[%s64 + $0x4] sm:$0xff]
    %v627 = vld [vmem:[%s64 + $0xc] sm:$0xf]
    %v628 = vld [vmem:[%s64 + $0x24] sm:$0xff]
    %v629 = vld [vmem:[%s64 + $0x2c] sm:$0xf]
    %634 = vrot.lane.b32.xlu0 %v626, 111
    %v635 = vpop.permute.xlu0 %634
    %636 = vrot.lane.b32.xlu0 %v627, 111
    %v637 = vpop.permute.xlu0 %636
    %638 = vrot.lane.b32.xlu0 %v628, 111
    %v639 = vpop.permute.xlu0 %638
    %640 = vrot.lane.b32.xlu0 %v629, 111
    %v641 = vpop.permute.xlu0 %640
    %v642 = vrot.slane %v635, 4
    %v643 = vrot.slane %v637, 4
    %v644 = vrot.slane %v639, 4
    %v645 = vrot.slane %v641, 4
    %v646 = vsel %vm238, %v642, %v643
    %vm647 = vcmask 908288
    %v648 = vsel %vm647, %v635, %v646
    %v649 = vsel %vm238, %v644, %v645
    %v650 = vsel %vm647, %v639, %v649
    %653 = vst [vmem:[#allocation3 + $0x100] sm:$0xff] %v648
    %654 = vst [vmem:[#allocation3 + $0x110] sm:$0xff] %v650
    %v655 = vld [vmem:[%s64 + $0x14] sm:$0xff]
    %v656 = vld [vmem:[%s64 + $0x1c] sm:$0xf]
    %v657 = vld [vmem:[%s64 + $0x34] sm:$0xff]
    %v658 = vld [vmem:[%s64 + $0x3c] sm:$0xf]
    %663 = vrot.lane.b32.xlu0 %v655, 111
    %v664 = vpop.permute.xlu0 %663
    %665 = vrot.lane.b32.xlu0 %v656, 111
    %v666 = vpop.permute.xlu0 %665
    %667 = vrot.lane.b32.xlu0 %v657, 111
    %v668 = vpop.permute.xlu0 %667
    %669 = vrot.lane.b32.xlu0 %v658, 111
    %v670 = vpop.permute.xlu0 %669
    %v671 = vrot.slane %v664, 4
    %v672 = vrot.slane %v666, 4
    %v673 = vrot.slane %v668, 4
    %v674 = vrot.slane %v670, 4
    %v675 = vsel %vm238, %v671, %v672
    %v676 = vsel %vm647, %v664, %v675
    %v677 = vsel %vm238, %v673, %v674
    %v678 = vsel %vm647, %v668, %v677
    %681 = vst [vmem:[#allocation3 + $0x108] sm:$0xff] %v676
    %682 = vst [vmem:[#allocation3 + $0x118] sm:$0xff] %v678
    %v683 = vld [vmem:[%s2] sm:$0xff]
    %v684 = vld [vmem:[%s2 + $0x8] sm:$0xff]
    %v685 = vld [vmem:[#allocation3] sm:$0xff]
    %v686 = vld [vmem:[#allocation3 + $0x8] sm:$0xff]
    %v687 = vld [vmem:[#allocation3 + $0x10] sm:$0xff]
    %v688 = vld [vmem:[#allocation3 + $0x18] sm:$0xff]
    %v689 = vld [vmem:[#allocation3 + $0x20] sm:$0xff]
    %v690 = vld [vmem:[#allocation3 + $0x28] sm:$0xff]
    %v691 = vld [vmem:[#allocation3 + $0x30] sm:$0xff]
    %v692 = vld [vmem:[#allocation3 + $0x38] sm:$0xff]
    %v693 = vld [vmem:[#allocation3 + $0x40] sm:$0xff]
    %v694 = vld [vmem:[#allocation3 + $0x48] sm:$0xff]
    %v695 = vld [vmem:[#allocation3 + $0x50] sm:$0xff]
    %v696 = vld [vmem:[#allocation3 + $0x58] sm:$0xff]
    %v697 = vld [vmem:[#allocation3 + $0x60] sm:$0xff]
    %v698 = vld [vmem:[#allocation3 + $0x68] sm:$0xff]
    %v699 = vld [vmem:[#allocation3 + $0x70] sm:$0xff]
    %v700 = vld [vmem:[#allocation3 + $0x78] sm:$0xff]
    %v701 = vld [vmem:[#allocation3 + $0x80] sm:$0xff]
    %v702 = vld [vmem:[#allocation3 + $0x88] sm:$0xff]
    %v703 = vld [vmem:[#allocation3 + $0x90] sm:$0xff]
    %v704 = vld [vmem:[#allocation3 + $0x98] sm:$0xff]
    %v705 = vld [vmem:[#allocation3 + $0xa0] sm:$0xff]
    %v706 = vld [vmem:[#allocation3 + $0xa8] sm:$0xff]
    %v707 = vld [vmem:[#allocation3 + $0xb0] sm:$0xff]
    %v708 = vld [vmem:[#allocation3 + $0xb8] sm:$0xff]
    %v709 = vld [vmem:[#allocation3 + $0xc0] sm:$0xff]
    %v710 = vld [vmem:[#allocation3 + $0xc8] sm:$0xff]
    %v711 = vld [vmem:[#allocation3 + $0xd0] sm:$0xff]
    %v712 = vld [vmem:[#allocation3 + $0xd8] sm:$0xff]
    %v713 = vld [vmem:[#allocation3 + $0xe0] sm:$0xff]
    %v714 = vld [vmem:[#allocation3 + $0xe8] sm:$0xff]
    %v715 = vld [vmem:[#allocation3 + $0xf0] sm:$0xff]
    %v716 = vld [vmem:[#allocation3 + $0xf8] sm:$0xff]
    %v717 = vld [vmem:[#allocation3 + $0x100] sm:$0xff]
    %v718 = vld [vmem:[#allocation3 + $0x108] sm:$0xff]
    %v719 = vld [vmem:[#allocation3 + $0x110] sm:$0xff]
    %v720 = vld [vmem:[#allocation3 + $0x118] sm:$0xff]
    %v721 = vld [vmem:[%s3] sm:$0xff]
    %v722 = vld [vmem:[%s3 + $0x8] sm:$0xff]
    %724 = vset.pattern.permute.xlu0 0
    %725 = vperm.xlu0 %724, %v721
    %v726 = vpop.permute.xlu0 %725
    %729 = vset.pattern.permute.xlu0 0
    %730 = vperm.xlu0 %729, %v722
    %v731 = vpop.permute.xlu0 %730
    %v735 = vunpack.c.l.b16 %v683
    %v736 = vunpack.c.h.b16 %v683
    %v737 = vunpack.c.l.b16 %v684
    %v738 = vunpack.c.h.b16 %v684
    %v739 = vpack.c.b16 %v737, %v735
    %v740 = vpack.c.b16 %v738, %v736
    %v778 = vunpack.c.l.b16 %v685
    %v779 = vunpack.c.h.b16 %v685
    %v780 = vunpack.c.l.b16 %v686
    %v781 = vunpack.c.h.b16 %v686
    %v782 = vunpack.c.l.b16 %v687
    %v783 = vunpack.c.h.b16 %v687
    %v784 = vunpack.c.l.b16 %v688
    %v785 = vunpack.c.h.b16 %v688
    %v786 = vunpack.c.l.b16 %v689
    %v787 = vunpack.c.h.b16 %v689
    %v788 = vunpack.c.l.b16 %v690
    %v789 = vunpack.c.h.b16 %v690
    %v790 = vunpack.c.l.b16 %v691
    %v791 = vunpack.c.h.b16 %v691
    %v792 = vunpack.c.l.b16 %v692
    %v793 = vunpack.c.h.b16 %v692
    %v794 = vunpack.c.l.b16 %v693
    %v795 = vunpack.c.h.b16 %v693
    %v796 = vunpack.c.l.b16 %v694
    %v797 = vunpack.c.h.b16 %v694
    %v798 = vunpack.c.l.b16 %v695
    %v799 = vunpack.c.h.b16 %v695
    %v800 = vunpack.c.l.b16 %v696
    %v801 = vunpack.c.h.b16 %v696
    %v802 = vunpack.c.l.b16 %v697
    %v803 = vunpack.c.h.b16 %v697
    %v804 = vunpack.c.l.b16 %v698
    %v805 = vunpack.c.h.b16 %v698
    %v806 = vunpack.c.l.b16 %v699
    %v807 = vunpack.c.h.b16 %v699
    %v808 = vunpack.c.l.b16 %v700
    %v809 = vunpack.c.h.b16 %v700
    %v810 = vunpack.c.l.b16 %v701
    %v811 = vunpack.c.h.b16 %v701
    %v812 = vunpack.c.l.b16 %v702
    %v813 = vunpack.c.h.b16 %v702
    %v814 = vunpack.c.l.b16 %v703
    %v815 = vunpack.c.h.b16 %v703
    %v816 = vunpack.c.l.b16 %v704
    %v817 = vunpack.c.h.b16 %v704
    %v818 = vunpack.c.l.b16 %v705
    %v819 = vunpack.c.h.b16 %v705
    %v820 = vunpack.c.l.b16 %v706
    %v821 = vunpack.c.h.b16 %v706
    %v822 = vunpack.c.l.b16 %v707
    %v823 = vunpack.c.h.b16 %v707
    %v824 = vunpack.c.l.b16 %v708
    %v825 = vunpack.c.h.b16 %v708
    %v826 = vunpack.c.l.b16 %v709
    %v827 = vunpack.c.h.b16 %v709
    %v828 = vunpack.c.l.b16 %v710
    %v829 = vunpack.c.h.b16 %v710
    %v830 = vunpack.c.l.b16 %v711
    %v831 = vunpack.c.h.b16 %v711
    %v832 = vunpack.c.l.b16 %v712
    %v833 = vunpack.c.h.b16 %v712
    %v834 = vunpack.c.l.b16 %v713
    %v835 = vunpack.c.h.b16 %v713
    %v836 = vunpack.c.l.b16 %v714
    %v837 = vunpack.c.h.b16 %v714
    %v838 = vunpack.c.l.b16 %v715
    %v839 = vunpack.c.h.b16 %v715
    %v840 = vunpack.c.l.b16 %v716
    %v841 = vunpack.c.h.b16 %v716
    %v842 = vunpack.c.l.b16 %v717
    %v843 = vunpack.c.h.b16 %v717
    %v844 = vunpack.c.l.b16 %v718
    %v845 = vunpack.c.h.b16 %v718
    %v846 = vunpack.c.l.b16 %v719
    %v847 = vunpack.c.h.b16 %v719
    %v848 = vunpack.c.l.b16 %v720
    %v849 = vunpack.c.h.b16 %v720
    %v850 = vpack.c.b16 %v782, %v778
    %v851 = vpack.c.b16 %v783, %v779
    %v852 = vpack.c.b16 %v784, %v780
    %v853 = vpack.c.b16 %v785, %v781
    %v854 = vpack.c.b16 %v790, %v786
    %v855 = vpack.c.b16 %v791, %v787
    %v856 = vpack.c.b16 %v792, %v788
    %v857 = vpack.c.b16 %v793, %v789
    %v858 = vpack.c.b16 %v798, %v794
    %v859 = vpack.c.b16 %v799, %v795
    %v860 = vpack.c.b16 %v800, %v796
    %v861 = vpack.c.b16 %v801, %v797
    %v862 = vpack.c.b16 %v806, %v802
    %v863 = vpack.c.b16 %v807, %v803
    %v864 = vpack.c.b16 %v808, %v804
    %v865 = vpack.c.b16 %v809, %v805
    %v866 = vpack.c.b16 %v814, %v810
    %v867 = vpack.c.b16 %v815, %v811
    %v868 = vpack.c.b16 %v816, %v812
    %v869 = vpack.c.b16 %v817, %v813
    %v870 = vpack.c.b16 %v822, %v818
    %v871 = vpack.c.b16 %v823, %v819
    %v872 = vpack.c.b16 %v824, %v820
    %v873 = vpack.c.b16 %v825, %v821
    %v874 = vpack.c.b16 %v830, %v826
    %v875 = vpack.c.b16 %v831, %v827
    %v876 = vpack.c.b16 %v832, %v828
    %v877 = vpack.c.b16 %v833, %v829
    %v878 = vpack.c.b16 %v838, %v834
    %v879 = vpack.c.b16 %v839, %v835
    %v880 = vpack.c.b16 %v840, %v836
    %v881 = vpack.c.b16 %v841, %v837
    %v882 = vpack.c.b16 %v846, %v842
    %v883 = vpack.c.b16 %v847, %v843
    %v884 = vpack.c.b16 %v848, %v844
    %v885 = vpack.c.b16 %v849, %v845
    %vm922 = vcmask 130048
    %v924 = vsel %vm922, %v740, 0
    %926 = vmatprep.subr.bf16.mxu0 %v879
    %927 = vmatpush1.bf16.msra.mxu0 %v878
    %928 = vmatprep.subr.bf16.mxu0 %v875
    %929 = vmatpush1.bf16.msra.mxu0 %v874
    %930 = vmatprep.subr.bf16.mxu0 %v871
    %931 = vmatpush1.bf16.msra.mxu0 %v870
    %932 = vmatprep.subr.bf16.mxu0 %v867
    %933 = vmatpush1.bf16.msra.mxu0 %v866
    %934 = vmatprep.subr.bf16.mxu0 %v863
    %935 = vmatpush1.bf16.msra.mxu0 %v862
    %936 = vmatprep.subr.bf16.mxu0 %v859
    %937 = vmatpush1.bf16.msra.mxu0 %v858
    %938 = vmatprep.subr.bf16.mxu0 %v855
    %939 = vmatpush1.bf16.msra.mxu0 %v854
    %940 = vmatprep.subr.bf16.mxu0 %v851
    %941 = vmatpush1.bf16.msra.mxu0 %v850
    %942 = vmatprep.subr.bf16.mxu0 0
    %943 = vmatpush2.bf16.msra.mxu0 0
    %944 = vmatprep.subr.bf16.mxu0 0
    %945 = vmatpush2.bf16.msra.mxu0 0
    %946 = vmatprep.subr.bf16.mxu0 0
    %947 = vmatpush2.bf16.msra.mxu0 0
    %948 = vmatprep.subr.bf16.mxu0 0
    %949 = vmatpush2.bf16.msra.mxu0 0
    %950 = vmatprep.subr.bf16.mxu0 0
    %951 = vmatpush2.bf16.msra.mxu0 0
    %952 = vmatprep.subr.bf16.mxu0 0
    %953 = vmatpush2.bf16.msra.mxu0 0
    %954 = vmatprep.subr.bf16.mxu0 0
    %955 = vmatpush2.bf16.msra.mxu0 0
    %956 = vmatprep.subr.bf16.mxu0 %v883
    %957 = vmatpush2.bf16.msra.mxu0 %v882
    %958 = vmatprep.mubr.bf16.mxu0 %v924
    %959 = vmatmul.mubr.bf16.gmra.mxu0 %v739
    %v960 = vpop.f32.mrf.mxu0
    %v961 = vadd.f32 %v726, %v960
    %v962 = vpop.f32.mrf.mxu0
    %v963 = vadd.f32 %v726, %v962
    %v964 = vpop.f32.mrf.mxu0
    %v965 = vadd.f32 %v731, %v964
    %v966 = vpop.f32.mrf.mxu0
    %v967 = vadd.f32 %v731, %v966
    %968 = vdwg.mxu0
    %969 = vmatprep.subr.bf16.mxu0 %v881
    %970 = vmatpush1.bf16.msra.mxu0 %v880
    %971 = vmatprep.subr.bf16.mxu0 %v877
    %972 = vmatpush1.bf16.msra.mxu0 %v876
    %973 = vmatprep.subr.bf16.mxu0 %v873
    %974 = vmatpush1.bf16.msra.mxu0 %v872
    %975 = vmatprep.subr.bf16.mxu0 %v869
    %976 = vmatpush1.bf16.msra.mxu0 %v868
    %977 = vmatprep.subr.bf16.mxu0 %v865
    %978 = vmatpush1.bf16.msra.mxu0 %v864
    %979 = vmatprep.subr.bf16.mxu0 %v861
    %980 = vmatpush1.bf16.msra.mxu0 %v860
    %981 = vmatprep.subr.bf16.mxu0 %v857
    %982 = vmatpush1.bf16.msra.mxu0 %v856
    %983 = vmatprep.subr.bf16.mxu0 %v853
    %984 = vmatpush1.bf16.msra.mxu0 %v852
    %985 = vmatprep.subr.bf16.mxu0 0
    %986 = vmatpush2.bf16.msra.mxu0 0
    %987 = vmatprep.subr.bf16.mxu0 0
    %988 = vmatpush2.bf16.msra.mxu0 0
    %989 = vmatprep.subr.bf16.mxu0 0
    %990 = vmatpush2.bf16.msra.mxu0 0
    %991 = vmatprep.subr.bf16.mxu0 0
    %992 = vmatpush2.bf16.msra.mxu0 0
    %993 = vmatprep.subr.bf16.mxu0 0
    %994 = vmatpush2.bf16.msra.mxu0 0
    %995 = vmatprep.subr.bf16.mxu0 0
    %996 = vmatpush2.bf16.msra.mxu0 0
    %997 = vmatprep.subr.bf16.mxu0 0
    %998 = vmatpush2.bf16.msra.mxu0 0
    %999 = vmatprep.subr.bf16.mxu0 %v885
    %1000 = vmatpush2.bf16.msra.mxu0 %v884
    %1001 = vmatprep.mubr.bf16.mxu0 %v924
    %1002 = vmatmul.mubr.bf16.gmra.mxu0 %v739
    %v1003 = vpop.f32.mrf.mxu0
    %v1004 = vadd.f32 %v726, %v1003
    %v1005 = vpop.f32.mrf.mxu0
    %v1006 = vadd.f32 %v726, %v1005
    %v1007 = vpop.f32.mrf.mxu0
    %v1008 = vadd.f32 %v731, %v1007
    %v1009 = vpop.f32.mrf.mxu0
    %v1010 = vadd.f32 %v731, %v1009
    %1011 = vdwg.mxu0
    %v1012 = vmax.f32 %v961, 0.0
    %v1013 = vmax.f32 %v963, 0.0
    %v1014 = vmax.f32 %v1004, 0.0
    %v1015 = vmax.f32 %v1006, 0.0
    %v1016 = vmax.f32 %v965, 0.0
    %v1017 = vmax.f32 %v967, 0.0
    %v1018 = vmax.f32 %v1008, 0.0
    %v1019 = vmax.f32 %v1010, 0.0
    %v1020 = vmul.f32 %v1012, %v90
    %v1021 = vmul.f32 %v1013, %v94
    %v1022 = vmul.f32 %v1016, %v90
    %v1023 = vmul.f32 %v1017, %v94
    %v1024 = vpack.c.bf16 %v1022, %v1020
    %v1025 = vpack.c.bf16 %v1023, %v1021
    %v1028 = vunpack.c.l.b16 %v1024
    %v1029 = vunpack.c.l.b16 %v1025
    %v1030 = vunpack.c.h.b16 %v1024
    %v1031 = vunpack.c.h.b16 %v1025
    %v1032 = vpack.c.b16 %v1029, %v1028
    %v1033 = vpack.c.b16 %v1031, %v1030
    %1036 = vst [vmem:[#allocation2 + $0x4] sm:$0xff] %v1032
    %1037 = vst [vmem:[#allocation2 + $0x24] sm:$0xff] %v1033
    %v1038 = vpack.c.bf16 %v1016, %v1012
    %v1039 = vpack.c.bf16 %v1017, %v1013
    %v1042 = vunpack.c.l.b16 %v1038
    %v1043 = vunpack.c.l.b16 %v1039
    %v1044 = vunpack.c.h.b16 %v1038
    %v1045 = vunpack.c.h.b16 %v1039
    %v1046 = vpack.c.b16 %v1043, %v1042
    %v1047 = vpack.c.b16 %v1045, %v1044
    %1050 = vst [vmem:[%s57 + $0x4] sm:$0xff] %v1046
    %1051 = vst [vmem:[%s57 + $0x24] sm:$0xff] %v1047
    %v1052 = vmul.f32 %v1012, %v140
    %v1053 = vmul.f32 %v1013, %v144
    %v1054 = vmul.f32 %v1016, %v140
    %v1055 = vmul.f32 %v1017, %v144
    %v1056 = vpack.c.bf16 %v1054, %v1052
    %v1057 = vpack.c.bf16 %v1055, %v1053
    %v1060 = vunpack.c.l.b16 %v1056
    %v1061 = vunpack.c.l.b16 %v1057
    %v1062 = vunpack.c.h.b16 %v1056
    %v1063 = vunpack.c.h.b16 %v1057
    %v1064 = vpack.c.b16 %v1061, %v1060
    %v1065 = vpack.c.b16 %v1063, %v1062
    %1068 = vst [vmem:[%s64 + $0x4] sm:$0xff] %v1064
    %1069 = vst [vmem:[%s64 + $0x24] sm:$0xff] %v1065
    %v1070 = vmul.f32 %v1014, %v90
    %v1071 = vmul.f32 %v1015, %v94
    %v1072 = vmul.f32 %v1018, %v90
    %v1073 = vmul.f32 %v1019, %v94
    %v1074 = vpack.c.bf16 %v1072, %v1070
    %v1075 = vpack.c.bf16 %v1073, %v1071
    %v1078 = vunpack.c.l.b16 %v1074
    %v1079 = vunpack.c.l.b16 %v1075
    %v1080 = vunpack.c.h.b16 %v1074
    %v1081 = vunpack.c.h.b16 %v1075
    %v1082 = vpack.c.b16 %v1079, %v1078
    %v1083 = vpack.c.b16 %v1081, %v1080
    %1086 = vst [vmem:[#allocation2 + $0x14] sm:$0xff] %v1082
    %1087 = vst [vmem:[#allocation2 + $0x34] sm:$0xff] %v1083
    %v1088 = vpack.c.bf16 %v1018, %v1014
    %v1089 = vpack.c.bf16 %v1019, %v1015
    %v1092 = vunpack.c.l.b16 %v1088
    %v1093 = vunpack.c.l.b16 %v1089
    %v1094 = vunpack.c.h.b16 %v1088
    %v1095 = vunpack.c.h.b16 %v1089
    %v1096 = vpack.c.b16 %v1093, %v1092
    %v1097 = vpack.c.b16 %v1095, %v1094
    %1100 = vst [vmem:[%s57 + $0x14] sm:$0xff] %v1096
    %1101 = vst [vmem:[%s57 + $0x34] sm:$0xff] %v1097
    %v1102 = vmul.f32 %v1014, %v140
    %v1103 = vmul.f32 %v1015, %v144
    %v1104 = vmul.f32 %v1018, %v140
    %v1105 = vmul.f32 %v1019, %v144
    %v1106 = vpack.c.bf16 %v1104, %v1102
    %v1107 = vpack.c.bf16 %v1105, %v1103
    %v1110 = vunpack.c.l.b16 %v1106
    %v1111 = vunpack.c.l.b16 %v1107
    %v1112 = vunpack.c.h.b16 %v1106
    %v1113 = vunpack.c.h.b16 %v1107
    %v1114 = vpack.c.b16 %v1111, %v1110
    %v1115 = vpack.c.b16 %v1113, %v1112
    %1118 = vst [vmem:[%s64 + $0x14] sm:$0xff] %v1114
    %1119 = vst [vmem:[%s64 + $0x34] sm:$0xff] %v1115
    %v1120 = vld [vmem:[#allocation2] sm:$0xff]
    %v1121 = vld [vmem:[#allocation2 + $0x8] sm:$0xf]
    %v1122 = vld [vmem:[#allocation2 + $0x20] sm:$0xff]
    %v1123 = vld [vmem:[#allocation2 + $0x28] sm:$0xf]
    %1128 = vrot.lane.b32.xlu0 %v1120, 17
    %v1129 = vpop.permute.xlu0 %1128
    %1130 = vrot.lane.b32.xlu0 %v1121, 17
    %v1131 = vpop.permute.xlu0 %1130
    %1132 = vrot.lane.b32.xlu0 %v1122, 17
    %v1133 = vpop.permute.xlu0 %1132
    %1134 = vrot.lane.b32.xlu0 %v1123, 17
    %v1135 = vpop.permute.xlu0 %1134
    %v1136 = vrot.slane %v1129, 4
    %v1137 = vrot.slane %v1131, 4
    %v1138 = vrot.slane %v1133, 4
    %v1139 = vrot.slane %v1135, 4
    %v1140 = vsel %vm238, %v1136, %v1137
    %v1141 = vsel %vm240, %v1129, %v1140
    %v1142 = vsel %vm238, %v1138, %v1139
    %v1143 = vsel %vm240, %v1133, %v1142
    %1146 = vst [vmem:[#allocation3] sm:$0xff] %v1141
    %1147 = vst [vmem:[#allocation3 + $0x10] sm:$0xff] %v1143
    %v1148 = vld [vmem:[#allocation2 + $0x10] sm:$0xff]
    %v1149 = vld [vmem:[#allocation2 + $0x18] sm:$0xf]
    %v1150 = vld [vmem:[#allocation2 + $0x30] sm:$0xff]
    %v1151 = vld [vmem:[#allocation2 + $0x38] sm:$0xf]
    %1156 = vrot.lane.b32.xlu0 %v1148, 17
    %v1157 = vpop.permute.xlu0 %1156
    %1158 = vrot.lane.b32.xlu0 %v1149, 17
    %v1159 = vpop.permute.xlu0 %1158
    %1160 = vrot.lane.b32.xlu0 %v1150, 17
    %v1161 = vpop.permute.xlu0 %1160
    %1162 = vrot.lane.b32.xlu0 %v1151, 17
    %v1163 = vpop.permute.xlu0 %1162
    %v1164 = vrot.slane %v1157, 4
    %v1165 = vrot.slane %v1159, 4
    %v1166 = vrot.slane %v1161, 4
    %v1167 = vrot.slane %v1163, 4
    %v1168 = vsel %vm238, %v1164, %v1165
    %v1169 = vsel %vm240, %v1157, %v1168
    %v1170 = vsel %vm238, %v1166, %v1167
    %v1171 = vsel %vm240, %v1161, %v1170
    %1174 = vst [vmem:[#allocation3 + $0x8] sm:$0xff] %v1169
    %1175 = vst [vmem:[#allocation3 + $0x18] sm:$0xff] %v1171
    %v1176 = vld [vmem:[%s57] sm:$0xff]
    %v1177 = vld [vmem:[%s57 + $0x8] sm:$0xf]
    %v1178 = vld [vmem:[%s57 + $0x20] sm:$0xff]
    %v1179 = vld [vmem:[%s57 + $0x28] sm:$0xf]
    %1184 = vrot.lane.b32.xlu0 %v1176, 16
    %v1185 = vpop.permute.xlu0 %1184
    %1186 = vrot.lane.b32.xlu0 %v1177, 16
    %v1187 = vpop.permute.xlu0 %1186
    %1188 = vrot.lane.b32.xlu0 %v1178, 16
    %v1189 = vpop.permute.xlu0 %1188
    %1190 = vrot.lane.b32.xlu0 %v1179, 16
    %v1191 = vpop.permute.xlu0 %1190
    %v1192 = vrot.slane %v1185, 4
    %v1193 = vrot.slane %v1187, 4
    %v1194 = vrot.slane %v1189, 4
    %v1195 = vrot.slane %v1191, 4
    %v1196 = vsel %vm238, %v1192, %v1193
    %v1197 = vsel %vm297, %v1185, %v1196
    %v1198 = vsel %vm238, %v1194, %v1195
    %v1199 = vsel %vm297, %v1189, %v1198
    %1202 = vst [vmem:[#allocation3 + $0x20] sm:$0xff] %v1197
    %1203 = vst [vmem:[#allocation3 + $0x30] sm:$0xff] %v1199
    %v1204 = vld [vmem:[%s57 + $0x10] sm:$0xff]
    %v1205 = vld [vmem:[%s57 + $0x18] sm:$0xf]
    %v1206 = vld [vmem:[%s57 + $0x30] sm:$0xff]
    %v1207 = vld [vmem:[%s57 + $0x38] sm:$0xf]
    %1212 = vrot.lane.b32.xlu0 %v1204, 16
    %v1213 = vpop.permute.xlu0 %1212
    %1214 = vrot.lane.b32.xlu0 %v1205, 16
    %v1215 = vpop.permute.xlu0 %1214
    %1216 = vrot.lane.b32.xlu0 %v1206, 16
    %v1217 = vpop.permute.xlu0 %1216
    %1218 = vrot.lane.b32.xlu0 %v1207, 16
    %v1219 = vpop.permute.xlu0 %1218
    %v1220 = vrot.slane %v1213, 4
    %v1221 = vrot.slane %v1215, 4
    %v1222 = vrot.slane %v1217, 4
    %v1223 = vrot.slane %v1219, 4
    %v1224 = vsel %vm238, %v1220, %v1221
    %v1225 = vsel %vm297, %v1213, %v1224
    %v1226 = vsel %vm238, %v1222, %v1223
    %v1227 = vsel %vm297, %v1217, %v1226
    %1230 = vst [vmem:[#allocation3 + $0x28] sm:$0xff] %v1225
    %1231 = vst [vmem:[#allocation3 + $0x38] sm:$0xff] %v1227
    %v1232 = vld [vmem:[%s64] sm:$0xff]
    %v1233 = vld [vmem:[%s64 + $0x8] sm:$0xf]
    %v1234 = vld [vmem:[%s64 + $0x20] sm:$0xff]
    %v1235 = vld [vmem:[%s64 + $0x28] sm:$0xf]
    %1240 = vrot.lane.b32.xlu0 %v1232, 15
    %v1241 = vpop.permute.xlu0 %1240
    %1242 = vrot.lane.b32.xlu0 %v1233, 15
    %v1243 = vpop.permute.xlu0 %1242
    %1244 = vrot.lane.b32.xlu0 %v1234, 15
    %v1245 = vpop.permute.xlu0 %1244
    %1246 = vrot.lane.b32.xlu0 %v1235, 15
    %v1247 = vpop.permute.xlu0 %1246
    %v1248 = vrot.slane %v1241, 4
    %v1249 = vrot.slane %v1243, 4
    %v1250 = vrot.slane %v1245, 4
    %v1251 = vrot.slane %v1247, 4
    %v1252 = vsel %vm238, %v1248, %v1249
    %v1253 = vsel %vm354, %v1241, %v1252
    %v1254 = vsel %vm238, %v1250, %v1251
    %v1255 = vsel %vm354, %v1245, %v1254
    %1258 = vst [vmem:[#allocation3 + $0x40] sm:$0xff] %v1253
    %1259 = vst [vmem:[#allocation3 + $0x50] sm:$0xff] %v1255
    %v1260 = vld [vmem:[%s64 + $0x10] sm:$0xff]
    %v1261 = vld [vmem:[%s64 + $0x18] sm:$0xf]
    %v1262 = vld [vmem:[%s64 + $0x30] sm:$0xff]
    %v1263 = vld [vmem:[%s64 + $0x38] sm:$0xf]
    %1268 = vrot.lane.b32.xlu0 %v1260, 15
    %v1269 = vpop.permute.xlu0 %1268
    %1270 = vrot.lane.b32.xlu0 %v1261, 15
    %v1271 = vpop.permute.xlu0 %1270
    %1272 = vrot.lane.b32.xlu0 %v1262, 15
    %v1273 = vpop.permute.xlu0 %1272
    %1274 = vrot.lane.b32.xlu0 %v1263, 15
    %v1275 = vpop.permute.xlu0 %1274
    %v1276 = vrot.slane %v1269, 4
    %v1277 = vrot.slane %v1271, 4
    %v1278 = vrot.slane %v1273, 4
    %v1279 = vrot.slane %v1275, 4
    %v1280 = vsel %vm238, %v1276, %v1277
    %v1281 = vsel %vm354, %v1269, %v1280
    %v1282 = vsel %vm238, %v1278, %v1279
    %v1283 = vsel %vm354, %v1273, %v1282
    %1286 = vst [vmem:[#allocation3 + $0x48] sm:$0xff] %v1281
    %1287 = vst [vmem:[#allocation3 + $0x58] sm:$0xff] %v1283
    %v1288 = vld [vmem:[#allocation2] sm:$0xff]
    %v1289 = vld [vmem:[#allocation2 + $0x8] sm:$0xf]
    %v1290 = vld [vmem:[#allocation2 + $0x20] sm:$0xff]
    %v1291 = vld [vmem:[#allocation2 + $0x28] sm:$0xf]
    %1296 = vrot.lane.b32.xlu0 %v1288, 1
    %v1297 = vpop.permute.xlu0 %1296
    %1298 = vrot.lane.b32.xlu0 %v1289, 1
    %v1299 = vpop.permute.xlu0 %1298
    %1300 = vrot.lane.b32.xlu0 %v1290, 1
    %v1301 = vpop.permute.xlu0 %1300
    %1302 = vrot.lane.b32.xlu0 %v1291, 1
    %v1303 = vpop.permute.xlu0 %1302
    %v1304 = vrot.slane %v1297, 4
    %v1305 = vrot.slane %v1299, 4
    %v1306 = vrot.slane %v1301, 4
    %v1307 = vrot.slane %v1303, 4
    %v1308 = vsel %vm238, %v1304, %v1305
    %v1309 = vsel %vm411, %v1297, %v1308
    %v1310 = vsel %vm238, %v1306, %v1307
    %v1311 = vsel %vm411, %v1301, %v1310
    %1314 = vst [vmem:[#allocation3 + $0x60] sm:$0xff] %v1309
    %1315 = vst [vmem:[#allocation3 + $0x70] sm:$0xff] %v1311
    %v1316 = vld [vmem:[#allocation2 + $0x10] sm:$0xff]
    %v1317 = vld [vmem:[#allocation2 + $0x18] sm:$0xf]
    %v1318 = vld [vmem:[#allocation2 + $0x30] sm:$0xff]
    %v1319 = vld [vmem:[#allocation2 + $0x38] sm:$0xf]
    %1324 = vrot.lane.b32.xlu0 %v1316, 1
    %v1325 = vpop.permute.xlu0 %1324
    %1326 = vrot.lane.b32.xlu0 %v1317, 1
    %v1327 = vpop.permute.xlu0 %1326
    %1328 = vrot.lane.b32.xlu0 %v1318, 1
    %v1329 = vpop.permute.xlu0 %1328
    %1330 = vrot.lane.b32.xlu0 %v1319, 1
    %v1331 = vpop.permute.xlu0 %1330
    %v1332 = vrot.slane %v1325, 4
    %v1333 = vrot.slane %v1327, 4
    %v1334 = vrot.slane %v1329, 4
    %v1335 = vrot.slane %v1331, 4
    %v1336 = vsel %vm238, %v1332, %v1333
    %v1337 = vsel %vm411, %v1325, %v1336
    %v1338 = vsel %vm238, %v1334, %v1335
    %v1339 = vsel %vm411, %v1329, %v1338
    %1342 = vst [vmem:[#allocation3 + $0x68] sm:$0xff] %v1337
    %1343 = vst [vmem:[#allocation3 + $0x78] sm:$0xff] %v1339
    %v1344 = vld [vmem:[%s57 + $0x4] sm:$0xff]
    %v1345 = vld [vmem:[%s57 + $0x24] sm:$0xff]
    %1346 = vst [vmem:[#allocation3 + $0x80] sm:$0xff] %v1344
    %1347 = vst [vmem:[#allocation3 + $0x90] sm:$0xff] %v1345
    %v1348 = vld [vmem:[%s57 + $0x14] sm:$0xff]
    %v1349 = vld [vmem:[%s57 + $0x34] sm:$0xff]
    %1350 = vst [vmem:[#allocation3 + $0x88] sm:$0xff] %v1348
    %1351 = vst [vmem:[#allocation3 + $0x98] sm:$0xff] %v1349
    %v1352 = vld [vmem:[%s64 + $0x4] sm:$0xff]
    %v1353 = vld [vmem:[%s64 + $0xc] sm:$0xf]
    %v1354 = vld [vmem:[%s64 + $0x24] sm:$0xff]
    %v1355 = vld [vmem:[%s64 + $0x2c] sm:$0xf]
    %1360 = vrot.lane.b32.xlu0 %v1352, 127
    %v1361 = vpop.permute.xlu0 %1360
    %1362 = vrot.lane.b32.xlu0 %v1353, 127
    %v1363 = vpop.permute.xlu0 %1362
    %1364 = vrot.lane.b32.xlu0 %v1354, 127
    %v1365 = vpop.permute.xlu0 %1364
    %1366 = vrot.lane.b32.xlu0 %v1355, 127
    %v1367 = vpop.permute.xlu0 %1366
    %v1368 = vrot.slane %v1361, 4
    %v1369 = vrot.slane %v1363, 4
    %v1370 = vrot.slane %v1365, 4
    %v1371 = vrot.slane %v1367, 4
    %v1372 = vsel %vm238, %v1368, %v1369
    %v1373 = vsel %vm476, %v1361, %v1372
    %v1374 = vsel %vm238, %v1370, %v1371
    %v1375 = vsel %vm476, %v1365, %v1374
    %1378 = vst [vmem:[#allocation3 + $0xa0] sm:$0xff] %v1373
    %1379 = vst [vmem:[#allocation3 + $0xb0] sm:$0xff] %v1375
    %v1380 = vld [vmem:[%s64 + $0x14] sm:$0xff]
    %v1381 = vld [vmem:[%s64 + $0x1c] sm:$0xf]
    %v1382 = vld [vmem:[%s64 + $0x34] sm:$0xff]
    %v1383 = vld [vmem:[%s64 + $0x3c] sm:$0xf]
    %1388 = vrot.lane.b32.xlu0 %v1380, 127
    %v1389 = vpop.permute.xlu0 %1388
    %1390 = vrot.lane.b32.xlu0 %v1381, 127
    %v1391 = vpop.permute.xlu0 %1390
    %1392 = vrot.lane.b32.xlu0 %v1382, 127
    %v1393 = vpop.permute.xlu0 %1392
    %1394 = vrot.lane.b32.xlu0 %v1383, 127
    %v1395 = vpop.permute.xlu0 %1394
    %v1396 = vrot.slane %v1389, 4
    %v1397 = vrot.slane %v1391, 4
    %v1398 = vrot.slane %v1393, 4
    %v1399 = vrot.slane %v1395, 4
    %v1400 = vsel %vm238, %v1396, %v1397
    %v1401 = vsel %vm476, %v1389, %v1400
    %v1402 = vsel %vm238, %v1398, %v1399
    %v1403 = vsel %vm476, %v1393, %v1402
    %1406 = vst [vmem:[#allocation3 + $0xa8] sm:$0xff] %v1401
    %1407 = vst [vmem:[#allocation3 + $0xb8] sm:$0xff] %v1403
    %v1408 = vld [vmem:[#allocation2 + $0x4] sm:$0xff]
    %v1409 = vld [vmem:[#allocation2 + $0xc] sm:$0xf]
    %v1410 = vld [vmem:[#allocation2 + $0x24] sm:$0xff]
    %v1411 = vld [vmem:[#allocation2 + $0x2c] sm:$0xf]
    %1416 = vrot.lane.b32.xlu0 %v1408, 113
    %v1417 = vpop.permute.xlu0 %1416
    %1418 = vrot.lane.b32.xlu0 %v1409, 113
    %v1419 = vpop.permute.xlu0 %1418
    %1420 = vrot.lane.b32.xlu0 %v1410, 113
    %v1421 = vpop.permute.xlu0 %1420
    %1422 = vrot.lane.b32.xlu0 %v1411, 113
    %v1423 = vpop.permute.xlu0 %1422
    %v1424 = vrot.slane %v1417, 4
    %v1425 = vrot.slane %v1419, 4
    %v1426 = vrot.slane %v1421, 4
    %v1427 = vrot.slane %v1423, 4
    %v1428 = vsel %vm238, %v1424, %v1425
    %v1429 = vsel %vm533, %v1417, %v1428
    %v1430 = vsel %vm238, %v1426, %v1427
    %v1431 = vsel %vm533, %v1421, %v1430
    %1434 = vst [vmem:[#allocation3 + $0xc0] sm:$0xff] %v1429
    %1435 = vst [vmem:[#allocation3 + $0xd0] sm:$0xff] %v1431
    %v1436 = vld [vmem:[#allocation2 + $0x14] sm:$0xff]
    %v1437 = vld [vmem:[#allocation2 + $0x1c] sm:$0xf]
    %v1438 = vld [vmem:[#allocation2 + $0x34] sm:$0xff]
    %v1439 = vld [vmem:[#allocation2 + $0x3c] sm:$0xf]
    %1444 = vrot.lane.b32.xlu0 %v1436, 113
    %v1445 = vpop.permute.xlu0 %1444
    %1446 = vrot.lane.b32.xlu0 %v1437, 113
    %v1447 = vpop.permute.xlu0 %1446
    %1448 = vrot.lane.b32.xlu0 %v1438, 113
    %v1449 = vpop.permute.xlu0 %1448
    %1450 = vrot.lane.b32.xlu0 %v1439, 113
    %v1451 = vpop.permute.xlu0 %1450
    %v1452 = vrot.slane %v1445, 4
    %v1453 = vrot.slane %v1447, 4
    %v1454 = vrot.slane %v1449, 4
    %v1455 = vrot.slane %v1451, 4
    %v1456 = vsel %vm238, %v1452, %v1453
    %v1457 = vsel %vm533, %v1445, %v1456
    %v1458 = vsel %vm238, %v1454, %v1455
    %v1459 = vsel %vm533, %v1449, %v1458
    %1462 = vst [vmem:[#allocation3 + $0xc8] sm:$0xff] %v1457
    %1463 = vst [vmem:[#allocation3 + $0xd8] sm:$0xff] %v1459
    %v1464 = vld [vmem:[%s57 + $0x4] sm:$0xff]
    %v1465 = vld [vmem:[%s57 + $0xc] sm:$0xf]
    %v1466 = vld [vmem:[%s57 + $0x24] sm:$0xff]
    %v1467 = vld [vmem:[%s57 + $0x2c] sm:$0xf]
    %1472 = vrot.lane.b32.xlu0 %v1464, 112
    %v1473 = vpop.permute.xlu0 %1472
    %1474 = vrot.lane.b32.xlu0 %v1465, 112
    %v1475 = vpop.permute.xlu0 %1474
    %1476 = vrot.lane.b32.xlu0 %v1466, 112
    %v1477 = vpop.permute.xlu0 %1476
    %1478 = vrot.lane.b32.xlu0 %v1467, 112
    %v1479 = vpop.permute.xlu0 %1478
    %v1480 = vrot.slane %v1473, 4
    %v1481 = vrot.slane %v1475, 4
    %v1482 = vrot.slane %v1477, 4
    %v1483 = vrot.slane %v1479, 4
    %v1484 = vsel %vm238, %v1480, %v1481
    %v1485 = vsel %vm590, %v1473, %v1484
    %v1486 = vsel %vm238, %v1482, %v1483
    %v1487 = vsel %vm590, %v1477, %v1486
    %1490 = vst [vmem:[#allocation3 + $0xe0] sm:$0xff] %v1485
    %1491 = vst [vmem:[#allocation3 + $0xf0] sm:$0xff] %v1487
    %v1492 = vld [vmem:[%s57 + $0x14] sm:$0xff]
    %v1493 = vld [vmem:[%s57 + $0x1c] sm:$0xf]
    %v1494 = vld [vmem:[%s57 + $0x34] sm:$0xff]
    %v1495 = vld [vmem:[%s57 + $0x3c] sm:$0xf]
    %1500 = vrot.lane.b32.xlu0 %v1492, 112
    %v1501 = vpop.permute.xlu0 %1500
    %1502 = vrot.lane.b32.xlu0 %v1493, 112
    %v1503 = vpop.permute.xlu0 %1502
    %1504 = vrot.lane.b32.xlu0 %v1494, 112
    %v1505 = vpop.permute.xlu0 %1504
    %1506 = vrot.lane.b32.xlu0 %v1495, 112
    %v1507 = vpop.permute.xlu0 %1506
    %v1508 = vrot.slane %v1501, 4
    %v1509 = vrot.slane %v1503, 4
    %v1510 = vrot.slane %v1505, 4
    %v1511 = vrot.slane %v1507, 4
    %v1512 = vsel %vm238, %v1508, %v1509
    %v1513 = vsel %vm590, %v1501, %v1512
    %v1514 = vsel %vm238, %v1510, %v1511
    %v1515 = vsel %vm590, %v1505, %v1514
    %1518 = vst [vmem:[#allocation3 + $0xe8] sm:$0xff] %v1513
    %1519 = vst [vmem:[#allocation3 + $0xf8] sm:$0xff] %v1515
    %v1520 = vld [vmem:[%s64 + $0x4] sm:$0xff]
    %v1521 = vld [vmem:[%s64 + $0xc] sm:$0xf]
    %v1522 = vld [vmem:[%s64 + $0x24] sm:$0xff]
    %v1523 = vld [vmem:[%s64 + $0x2c] sm:$0xf]
    %1528 = vrot.lane.b32.xlu0 %v1520, 111
    %v1529 = vpop.permute.xlu0 %1528
    %1530 = vrot.lane.b32.xlu0 %v1521, 111
    %v1531 = vpop.permute.xlu0 %1530
    %1532 = vrot.lane.b32.xlu0 %v1522, 111
    %v1533 = vpop.permute.xlu0 %1532
    %1534 = vrot.lane.b32.xlu0 %v1523, 111
    %v1535 = vpop.permute.xlu0 %1534
    %v1536 = vrot.slane %v1529, 4
    %v1537 = vrot.slane %v1531, 4
    %v1538 = vrot.slane %v1533, 4
    %v1539 = vrot.slane %v1535, 4
    %v1540 = vsel %vm238, %v1536, %v1537
    %v1541 = vsel %vm647, %v1529, %v1540
    %v1542 = vsel %vm238, %v1538, %v1539
    %v1543 = vsel %vm647, %v1533, %v1542
    %1546 = vst [vmem:[#allocation3 + $0x100] sm:$0xff] %v1541
    %1547 = vst [vmem:[#allocation3 + $0x110] sm:$0xff] %v1543
    %v1548 = vld [vmem:[%s64 + $0x14] sm:$0xff]
    %v1549 = vld [vmem:[%s64 + $0x1c] sm:$0xf]
    %v1550 = vld [vmem:[%s64 + $0x34] sm:$0xff]
    %v1551 = vld [vmem:[%s64 + $0x3c] sm:$0xf]
    %1556 = vrot.lane.b32.xlu0 %v1548, 111
    %v1557 = vpop.permute.xlu0 %1556
    %1558 = vrot.lane.b32.xlu0 %v1549, 111
    %v1559 = vpop.permute.xlu0 %1558
    %1560 = vrot.lane.b32.xlu0 %v1550, 111
    %v1561 = vpop.permute.xlu0 %1560
    %1562 = vrot.lane.b32.xlu0 %v1551, 111
    %v1563 = vpop.permute.xlu0 %1562
    %v1564 = vrot.slane %v1557, 4
    %v1565 = vrot.slane %v1559, 4
    %v1566 = vrot.slane %v1561, 4
    %v1567 = vrot.slane %v1563, 4
    %v1568 = vsel %vm238, %v1564, %v1565
    %v1569 = vsel %vm647, %v1557, %v1568
    %v1570 = vsel %vm238, %v1566, %v1567
    %v1571 = vsel %vm647, %v1561, %v1570
    %1574 = vst [vmem:[#allocation3 + $0x108] sm:$0xff] %v1569
    %1575 = vst [vmem:[#allocation3 + $0x118] sm:$0xff] %v1571
    %v1576 = vld [vmem:[%s4] sm:$0xff]
    %v1577 = vld [vmem:[%s4 + $0x8] sm:$0xff]
    %v1578 = vld [vmem:[#allocation3] sm:$0xff]
    %v1579 = vld [vmem:[#allocation3 + $0x8] sm:$0xff]
    %v1580 = vld [vmem:[#allocation3 + $0x10] sm:$0xff]
    %v1581 = vld [vmem:[#allocation3 + $0x18] sm:$0xff]
    %v1582 = vld [vmem:[#allocation3 + $0x20] sm:$0xff]
    %v1583 = vld [vmem:[#allocation3 + $0x28] sm:$0xff]
    %v1584 = vld [vmem:[#allocation3 + $0x30] sm:$0xff]
    %v1585 = vld [vmem:[#allocation3 + $0x38] sm:$0xff]
    %v1586 = vld [vmem:[#allocation3 + $0x40] sm:$0xff]
    %v1587 = vld [vmem:[#allocation3 + $0x48] sm:$0xff]
    %v1588 = vld [vmem:[#allocation3 + $0x50] sm:$0xff]
    %v1589 = vld [vmem:[#allocation3 + $0x58] sm:$0xff]
    %v1590 = vld [vmem:[#allocation3 + $0x60] sm:$0xff]
    %v1591 = vld [vmem:[#allocation3 + $0x68] sm:$0xff]
    %v1592 = vld [vmem:[#allocation3 + $0x70] sm:$0xff]
    %v1593 = vld [vmem:[#allocation3 + $0x78] sm:$0xff]
    %v1594 = vld [vmem:[#allocation3 + $0x80] sm:$0xff]
    %v1595 = vld [vmem:[#allocation3 + $0x88] sm:$0xff]
    %v1596 = vld [vmem:[#allocation3 + $0x90] sm:$0xff]
    %v1597 = vld [vmem:[#allocation3 + $0x98] sm:$0xff]
    %v1598 = vld [vmem:[#allocation3 + $0xa0] sm:$0xff]
    %v1599 = vld [vmem:[#allocation3 + $0xa8] sm:$0xff]
    %v1600 = vld [vmem:[#allocation3 + $0xb0] sm:$0xff]
    %v1601 = vld [vmem:[#allocation3 + $0xb8] sm:$0xff]
    %v1602 = vld [vmem:[#allocation3 + $0xc0] sm:$0xff]
    %v1603 = vld [vmem:[#allocation3 + $0xc8] sm:$0xff]
    %v1604 = vld [vmem:[#allocation3 + $0xd0] sm:$0xff]
    %v1605 = vld [vmem:[#allocation3 + $0xd8] sm:$0xff]
    %v1606 = vld [vmem:[#allocation3 + $0xe0] sm:$0xff]
    %v1607 = vld [vmem:[#allocation3 + $0xe8] sm:$0xff]
    %v1608 = vld [vmem:[#allocation3 + $0xf0] sm:$0xff]
    %v1609 = vld [vmem:[#allocation3 + $0xf8] sm:$0xff]
    %v1610 = vld [vmem:[#allocation3 + $0x100] sm:$0xff]
    %v1611 = vld [vmem:[#allocation3 + $0x108] sm:$0xff]
    %v1612 = vld [vmem:[#allocation3 + $0x110] sm:$0xff]
    %v1613 = vld [vmem:[#allocation3 + $0x118] sm:$0xff]
    %v1614 = vld [vmem:[%s5] sm:$0xff]
    %v1615 = vld [vmem:[%s5 + $0x8] sm:$0xff]
    %1617 = vset.pattern.permute.xlu0 0
    %1618 = vperm.xlu0 %1617, %v1614
    %v1619 = vpop.permute.xlu0 %1618
    %1622 = vset.pattern.permute.xlu0 0
    %1623 = vperm.xlu0 %1622, %v1615
    %v1624 = vpop.permute.xlu0 %1623
    %v1628 = vunpack.c.l.b16 %v1576
    %v1629 = vunpack.c.h.b16 %v1576
    %v1630 = vunpack.c.l.b16 %v1577
    %v1631 = vunpack.c.h.b16 %v1577
    %v1632 = vpack.c.b16 %v1630, %v1628
    %v1633 = vpack.c.b16 %v1631, %v1629
    %v1671 = vunpack.c.l.b16 %v1578
    %v1672 = vunpack.c.h.b16 %v1578
    %v1673 = vunpack.c.l.b16 %v1579
    %v1674 = vunpack.c.h.b16 %v1579
    %v1675 = vunpack.c.l.b16 %v1580
    %v1676 = vunpack.c.h.b16 %v1580
    %v1677 = vunpack.c.l.b16 %v1581
    %v1678 = vunpack.c.h.b16 %v1581
    %v1679 = vunpack.c.l.b16 %v1582
    %v1680 = vunpack.c.h.b16 %v1582
    %v1681 = vunpack.c.l.b16 %v1583
    %v1682 = vunpack.c.h.b16 %v1583
    %v1683 = vunpack.c.l.b16 %v1584
    %v1684 = vunpack.c.h.b16 %v1584
    %v1685 = vunpack.c.l.b16 %v1585
    %v1686 = vunpack.c.h.b16 %v1585
    %v1687 = vunpack.c.l.b16 %v1586
    %v1688 = vunpack.c.h.b16 %v1586
    %v1689 = vunpack.c.l.b16 %v1587
    %v1690 = vunpack.c.h.b16 %v1587
    %v1691 = vunpack.c.l.b16 %v1588
    %v1692 = vunpack.c.h.b16 %v1588
    %v1693 = vunpack.c.l.b16 %v1589
    %v1694 = vunpack.c.h.b16 %v1589
    %v1695 = vunpack.c.l.b16 %v1590
    %v1696 = vunpack.c.h.b16 %v1590
    %v1697 = vunpack.c.l.b16 %v1591
    %v1698 = vunpack.c.h.b16 %v1591
    %v1699 = vunpack.c.l.b16 %v1592
    %v1700 = vunpack.c.h.b16 %v1592
    %v1701 = vunpack.c.l.b16 %v1593
    %v1702 = vunpack.c.h.b16 %v1593
    %v1703 = vunpack.c.l.b16 %v1594
    %v1704 = vunpack.c.h.b16 %v1594
    %v1705 = vunpack.c.l.b16 %v1595
    %v1706 = vunpack.c.h.b16 %v1595
    %v1707 = vunpack.c.l.b16 %v1596
    %v1708 = vunpack.c.h.b16 %v1596
    %v1709 = vunpack.c.l.b16 %v1597
    %v1710 = vunpack.c.h.b16 %v1597
    %v1711 = vunpack.c.l.b16 %v1598
    %v1712 = vunpack.c.h.b16 %v1598
    %v1713 = vunpack.c.l.b16 %v1599
    %v1714 = vunpack.c.h.b16 %v1599
    %v1715 = vunpack.c.l.b16 %v1600
    %v1716 = vunpack.c.h.b16 %v1600
    %v1717 = vunpack.c.l.b16 %v1601
    %v1718 = vunpack.c.h.b16 %v1601
    %v1719 = vunpack.c.l.b16 %v1602
    %v1720 = vunpack.c.h.b16 %v1602
    %v1721 = vunpack.c.l.b16 %v1603
    %v1722 = vunpack.c.h.b16 %v1603
    %v1723 = vunpack.c.l.b16 %v1604
    %v1724 = vunpack.c.h.b16 %v1604
    %v1725 = vunpack.c.l.b16 %v1605
    %v1726 = vunpack.c.h.b16 %v1605
    %v1727 = vunpack.c.l.b16 %v1606
    %v1728 = vunpack.c.h.b16 %v1606
    %v1729 = vunpack.c.l.b16 %v1607
    %v1730 = vunpack.c.h.b16 %v1607
    %v1731 = vunpack.c.l.b16 %v1608
    %v1732 = vunpack.c.h.b16 %v1608
    %v1733 = vunpack.c.l.b16 %v1609
    %v1734 = vunpack.c.h.b16 %v1609
    %v1735 = vunpack.c.l.b16 %v1610
    %v1736 = vunpack.c.h.b16 %v1610
    %v1737 = vunpack.c.l.b16 %v1611
    %v1738 = vunpack.c.h.b16 %v1611
    %v1739 = vunpack.c.l.b16 %v1612
    %v1740 = vunpack.c.h.b16 %v1612
    %v1741 = vunpack.c.l.b16 %v1613
    %v1742 = vunpack.c.h.b16 %v1613
    %v1743 = vpack.c.b16 %v1675, %v1671
    %v1744 = vpack.c.b16 %v1676, %v1672
    %v1745 = vpack.c.b16 %v1677, %v1673
    %v1746 = vpack.c.b16 %v1678, %v1674
    %v1747 = vpack.c.b16 %v1683, %v1679
    %v1748 = vpack.c.b16 %v1684, %v1680
    %v1749 = vpack.c.b16 %v1685, %v1681
    %v1750 = vpack.c.b16 %v1686, %v1682
    %v1751 = vpack.c.b16 %v1691, %v1687
    %v1752 = vpack.c.b16 %v1692, %v1688
    %v1753 = vpack.c.b16 %v1693, %v1689
    %v1754 = vpack.c.b16 %v1694, %v1690
    %v1755 = vpack.c.b16 %v1699, %v1695
    %v1756 = vpack.c.b16 %v1700, %v1696
    %v1757 = vpack.c.b16 %v1701, %v1697
    %v1758 = vpack.c.b16 %v1702, %v1698
    %v1759 = vpack.c.b16 %v1707, %v1703
    %v1760 = vpack.c.b16 %v1708, %v1704
    %v1761 = vpack.c.b16 %v1709, %v1705
    %v1762 = vpack.c.b16 %v1710, %v1706
    %v1763 = vpack.c.b16 %v1715, %v1711
    %v1764 = vpack.c.b16 %v1716, %v1712
    %v1765 = vpack.c.b16 %v1717, %v1713
    %v1766 = vpack.c.b16 %v1718, %v1714
    %v1767 = vpack.c.b16 %v1723, %v1719
    %v1768 = vpack.c.b16 %v1724, %v1720
    %v1769 = vpack.c.b16 %v1725, %v1721
    %v1770 = vpack.c.b16 %v1726, %v1722
    %v1771 = vpack.c.b16 %v1731, %v1727
    %v1772 = vpack.c.b16 %v1732, %v1728
    %v1773 = vpack.c.b16 %v1733, %v1729
    %v1774 = vpack.c.b16 %v1734, %v1730
    %v1775 = vpack.c.b16 %v1739, %v1735
    %v1776 = vpack.c.b16 %v1740, %v1736
    %v1777 = vpack.c.b16 %v1741, %v1737
    %v1778 = vpack.c.b16 %v1742, %v1738
    %v1816 = vsel %vm922, %v1633, 0
    %1818 = vmatprep.subr.bf16.mxu0 %v1772
    %1819 = vmatpush1.bf16.msra.mxu0 %v1771
    %1820 = vmatprep.subr.bf16.mxu0 %v1768
    %1821 = vmatpush1.bf16.msra.mxu0 %v1767
    %1822 = vmatprep.subr.bf16.mxu0 %v1764
    %1823 = vmatpush1.bf16.msra.mxu0 %v1763
    %1824 = vmatprep.subr.bf16.mxu0 %v1760
    %1825 = vmatpush1.bf16.msra.mxu0 %v1759
    %1826 = vmatprep.subr.bf16.mxu0 %v1756
    %1827 = vmatpush1.bf16.msra.mxu0 %v1755
    %1828 = vmatprep.subr.bf16.mxu0 %v1752
    %1829 = vmatpush1.bf16.msra.mxu0 %v1751
    %1830 = vmatprep.subr.bf16.mxu0 %v1748
    %1831 = vmatpush1.bf16.msra.mxu0 %v1747
    %1832 = vmatprep.subr.bf16.mxu0 %v1744
    %1833 = vmatpush1.bf16.msra.mxu0 %v1743
    %1834 = vmatprep.subr.bf16.mxu0 0
    %1835 = vmatpush2.bf16.msra.mxu0 0
    %1836 = vmatprep.subr.bf16.mxu0 0
    %1837 = vmatpush2.bf16.msra.mxu0 0
    %1838 = vmatprep.subr.bf16.mxu0 0
    %1839 = vmatpush2.bf16.msra.mxu0 0
    %1840 = vmatprep.subr.bf16.mxu0 0
    %1841 = vmatpush2.bf16.msra.mxu0 0
    %1842 = vmatprep.subr.bf16.mxu0 0
    %1843 = vmatpush2.bf16.msra.mxu0 0
    %1844 = vmatprep.subr.bf16.mxu0 0
    %1845 = vmatpush2.bf16.msra.mxu0 0
    %1846 = vmatprep.subr.bf16.mxu0 0
    %1847 = vmatpush2.bf16.msra.mxu0 0
    %1848 = vmatprep.subr.bf16.mxu0 %v1776
    %1849 = vmatpush2.bf16.msra.mxu0 %v1775
    %1850 = vmatprep.mubr.bf16.mxu0 %v1816
    %1851 = vmatmul.mubr.bf16.gmra.mxu0 %v1632
    %v1852 = vpop.f32.mrf.mxu0
    %v1853 = vadd.f32 %v1619, %v1852
    %v1854 = vpop.f32.mrf.mxu0
    %v1855 = vadd.f32 %v1619, %v1854
    %v1856 = vpop.f32.mrf.mxu0
    %v1857 = vadd.f32 %v1624, %v1856
    %v1858 = vpop.f32.mrf.mxu0
    %v1859 = vadd.f32 %v1624, %v1858
    %1860 = vdwg.mxu0
    %1861 = vmatprep.subr.bf16.mxu0 %v1774
    %1862 = vmatpush1.bf16.msra.mxu0 %v1773
    %1863 = vmatprep.subr.bf16.mxu0 %v1770
    %1864 = vmatpush1.bf16.msra.mxu0 %v1769
    %1865 = vmatprep.subr.bf16.mxu0 %v1766
    %1866 = vmatpush1.bf16.msra.mxu0 %v1765
    %1867 = vmatprep.subr.bf16.mxu0 %v1762
    %1868 = vmatpush1.bf16.msra.mxu0 %v1761
    %1869 = vmatprep.subr.bf16.mxu0 %v1758
    %1870 = vmatpush1.bf16.msra.mxu0 %v1757
    %1871 = vmatprep.subr.bf16.mxu0 %v1754
    %1872 = vmatpush1.bf16.msra.mxu0 %v1753
    %1873 = vmatprep.subr.bf16.mxu0 %v1750
    %1874 = vmatpush1.bf16.msra.mxu0 %v1749
    %1875 = vmatprep.subr.bf16.mxu0 %v1746
    %1876 = vmatpush1.bf16.msra.mxu0 %v1745
    %1877 = vmatprep.subr.bf16.mxu0 0
    %1878 = vmatpush2.bf16.msra.mxu0 0
    %1879 = vmatprep.subr.bf16.mxu0 0
    %1880 = vmatpush2.bf16.msra.mxu0 0
    %1881 = vmatprep.subr.bf16.mxu0 0
    %1882 = vmatpush2.bf16.msra.mxu0 0
    %1883 = vmatprep.subr.bf16.mxu0 0
    %1884 = vmatpush2.bf16.msra.mxu0 0
    %1885 = vmatprep.subr.bf16.mxu0 0
    %1886 = vmatpush2.bf16.msra.mxu0 0
    %1887 = vmatprep.subr.bf16.mxu0 0
    %1888 = vmatpush2.bf16.msra.mxu0 0
    %1889 = vmatprep.subr.bf16.mxu0 0
    %1890 = vmatpush2.bf16.msra.mxu0 0
    %1891 = vmatprep.subr.bf16.mxu0 %v1778
    %1892 = vmatpush2.bf16.msra.mxu0 %v1777
    %1893 = vmatprep.mubr.bf16.mxu0 %v1816
    %1894 = vmatmul.mubr.bf16.gmra.mxu0 %v1632
    %v1895 = vpop.f32.mrf.mxu0
    %v1896 = vadd.f32 %v1619, %v1895
    %v1897 = vpop.f32.mrf.mxu0
    %v1898 = vadd.f32 %v1619, %v1897
    %v1899 = vpop.f32.mrf.mxu0
    %v1900 = vadd.f32 %v1624, %v1899
    %v1901 = vpop.f32.mrf.mxu0
    %v1902 = vadd.f32 %v1624, %v1901
    %1903 = vdwg.mxu0
    %v1904 = vadd.f32 %v1853, %v1855
    %1905 = vadd.xlane.f32.xlu0 %v1904
    %v1906 = vpop.xlane.xlu0 %1905
    %v1907 = vadd.f32 %v1857, %v1859
    %1908 = vadd.xlane.f32.xlu0 %v1907
    %v1909 = vpop.xlane.xlu0 %1908
    %v1910 = vrcp.pop 256.0
    %v1911 = vmul.f32 %v1906, %v1910
    %v1912 = vmul.f32 %v1909, %v1910
    %v1913 = vld [vmem:[%s6] sm:$0xff]
    %v1914 = vld [vmem:[%s6 + $0x8] sm:$0xff]
    %v1915 = vmul.f32 %v1913, %v1911
    %v1916 = vmul.f32 %v1914, %v1912
    %vm1917 = vcmask 31744
    %v1918 = vsel %vm1917, %v1915, 0.0
    %v1919 = vsel %vm1917, %v1916, 0.0
    %v1920 = vadd.f32 %v1918, %v1919
    %v1921 = vrot.slane %v1920, 4
    %v1922 = vadd.f32 %v1920, %v1921
    %v1923 = vrot.slane %v1922, 2
    %v1924 = vadd.f32 %v1922, %v1923
    %v1925 = vrot.slane %v1924, 1
    %v1926 = vadd.f32 %v1924, %v1925
    %v1927 = vld [vmem:[%s7] sm:$0x1]
    %v1928 = vadd.f32 %v1926, %v1927
    %v1929 = vmax.f32 %v1928, 0.0
    %v1930 = vld [vmem:[%s8] sm:$0xff]
    %v1931 = vld [vmem:[%s8 + $0x8] sm:$0xff]
    %v1932 = vlaneseq
    %v1933 = vshrl.u32 %v1932, 7
    %v1934 = vsub.s32 0, %v1933
    %v1935 = vrot.slane %v1929, %v1934
    %v1936 = vmul.f32 %v1930, %v1935
    %v1937 = vmul.f32 %v1931, %v1935
    %v1938 = vsel %vm1917, %v1936, 0.0
    %1939 = vadd.xlane.f32.xlu0 %v1938
    %v1940 = vpop.xlane.xlu0 %1939
    %v1941 = vsel %vm1917, %v1937, 0.0
    %1942 = vadd.xlane.f32.xlu0 %v1941
    %v1943 = vpop.xlane.xlu0 %1942
    %v1944 = vld [vmem:[%s9] sm:$0xff]
    %v1945 = vld [vmem:[%s9 + $0x8] sm:$0xff]
    %v1946 = vadd.f32 %v1940, %v1944
    %v1947 = vadd.f32 %v1943, %v1945
    %v1948 = vxor.u32 %v1946, 2147483648
    %v1949 = vxor.u32 %v1947, 2147483648
    %v1950 = vmul.f32 %v1948, 1.442695
    %v1951 = vpow.pop %v1950
    %v1952 = vmul.f32 %v1949, 1.442695
    %v1953 = vpow.pop %v1952
    %v1954 = vadd.f32 %v1951, 1.0
    %v1955 = vadd.f32 %v1953, 1.0
    %v1956 = vrcp.pop %v1954
    %v1957 = vmul.f32 1.0, %v1956
    %v1958 = vrcp.pop %v1955
    %v1959 = vmul.f32 1.0, %v1958
    %1961 = vset.pattern.permute.xlu0 0
    %1962 = vperm.xlu0 %1961, %v1957
    %v1963 = vpop.permute.xlu0 %1962
    %1966 = vset.pattern.permute.xlu0 0
    %1967 = vperm.xlu0 %1966, %v1959
    %v1968 = vpop.permute.xlu0 %1967
    %v1970 = vmul.f32 %v1853, %v1963
    %v1971 = vmul.f32 %v1855, %v1963
    %v1972 = vmul.f32 %v1857, %v1968
    %v1973 = vmul.f32 %v1859, %v1968
    %v1974 = vld [vmem:[#allocation4] sm:$0xff]
    %v1975 = vld [vmem:[#allocation4 + $0x8] sm:$0xff]
    %v1976 = vld [vmem:[#allocation4 + $0x10] sm:$0xff]
    %v1977 = vld [vmem:[#allocation4 + $0x18] sm:$0xff]
    %v1978 = vadd.f32 %v1970, %v1974
    %v1979 = vadd.f32 %v1971, %v1975
    %v1980 = vadd.f32 %v1972, %v1976
    %v1981 = vadd.f32 %v1973, %v1977
    %1982 = vst [vmem:[#allocation7] sm:$0xff] %v1978
    %1983 = vst [vmem:[#allocation7 + $0x8] sm:$0xff] %v1979
    %1984 = vst [vmem:[#allocation7 + $0x10] sm:$0xff] %v1980
    %1985 = vst [vmem:[#allocation7 + $0x18] sm:$0xff] %v1981
    %v1986 = vadd.f32 %v1896, %v1898
    %1987 = vadd.xlane.f32.xlu0 %v1986
    %v1988 = vpop.xlane.xlu0 %1987
    %v1989 = vadd.f32 %v1900, %v1902
    %1990 = vadd.xlane.f32.xlu0 %v1989
    %v1991 = vpop.xlane.xlu0 %1990
    %v1992 = vmul.f32 %v1988, %v1910
    %v1993 = vmul.f32 %v1991, %v1910
    %v1994 = vld [vmem:[%s6] sm:$0xff]
    %v1995 = vld [vmem:[%s6 + $0x8] sm:$0xff]
    %v1996 = vmul.f32 %v1994, %v1992
    %v1997 = vmul.f32 %v1995, %v1993
    %v1998 = vsel %vm1917, %v1996, 0.0
    %v1999 = vsel %vm1917, %v1997, 0.0
    %v2000 = vadd.f32 %v1998, %v1999
    %v2001 = vrot.slane %v2000, 4
    %v2002 = vadd.f32 %v2000, %v2001
    %v2003 = vrot.slane %v2002, 2
    %v2004 = vadd.f32 %v2002, %v2003
    %v2005 = vrot.slane %v2004, 1
    %v2006 = vadd.f32 %v2004, %v2005
    %v2007 = vld [vmem:[%s7] sm:$0x1]
    %v2008 = vadd.f32 %v2006, %v2007
    %v2009 = vmax.f32 %v2008, 0.0
    %v2010 = vld [vmem:[%s8] sm:$0xff]
    %v2011 = vld [vmem:[%s8 + $0x8] sm:$0xff]
    %v2012 = vlaneseq
    %v2013 = vshrl.u32 %v2012, 7
    %v2014 = vsub.s32 0, %v2013
    %v2015 = vrot.slane %v2009, %v2014
    %v2016 = vmul.f32 %v2010, %v2015
    %v2017 = vmul.f32 %v2011, %v2015
    %v2018 = vsel %vm1917, %v2016, 0.0
    %2019 = vadd.xlane.f32.xlu0 %v2018
    %v2020 = vpop.xlane.xlu0 %2019
    %v2021 = vsel %vm1917, %v2017, 0.0
    %2022 = vadd.xlane.f32.xlu0 %v2021
    %v2023 = vpop.xlane.xlu0 %2022
    %v2024 = vld [vmem:[%s9] sm:$0xff]
    %v2025 = vld [vmem:[%s9 + $0x8] sm:$0xff]
    %v2026 = vadd.f32 %v2020, %v2024
    %v2027 = vadd.f32 %v2023, %v2025
    %v2028 = vxor.u32 %v2026, 2147483648
    %v2029 = vxor.u32 %v2027, 2147483648
    %v2030 = vmul.f32 %v2028, 1.442695
    %v2031 = vpow.pop %v2030
    %v2032 = vmul.f32 %v2029, 1.442695
    %v2033 = vpow.pop %v2032
    %v2034 = vadd.f32 %v2031, 1.0
    %v2035 = vadd.f32 %v2033, 1.0
    %v2036 = vrcp.pop %v2034
    %v2037 = vmul.f32 1.0, %v2036
    %v2038 = vrcp.pop %v2035
    %v2039 = vmul.f32 1.0, %v2038
    %2041 = vset.pattern.permute.xlu0 0
    %2042 = vperm.xlu0 %2041, %v2037
    %v2043 = vpop.permute.xlu0 %2042
    %2046 = vset.pattern.permute.xlu0 0
    %2047 = vperm.xlu0 %2046, %v2039
    %v2048 = vpop.permute.xlu0 %2047
    %v2050 = vmul.f32 %v1896, %v2043
    %v2051 = vmul.f32 %v1898, %v2043
    %v2052 = vmul.f32 %v1900, %v2048
    %v2053 = vmul.f32 %v1902, %v2048
    %v2054 = vld [vmem:[%s163] sm:$0xff]
    %v2055 = vld [vmem:[%s163 + $0x8] sm:$0xff]
    %v2056 = vld [vmem:[%s163 + $0x10] sm:$0xff]
    %v2057 = vld [vmem:[%s163 + $0x18] sm:$0xff]
    %v2058 = vadd.f32 %v2050, %v2054
    %v2059 = vadd.f32 %v2051, %v2055
    %v2060 = vadd.f32 %v2052, %v2056
    %v2061 = vadd.f32 %v2053, %v2057
    %s2062 = scalar_lea.vmem [#allocation7], 32
    %2063 = vst [vmem:[%s2062] sm:$0xff] %v2058
    %2064 = vst [vmem:[%s2062 + $0x8] sm:$0xff] %v2059
    %2065 = vst [vmem:[%s2062 + $0x10] sm:$0xff] %v2060
    %2066 = vst [vmem:[%s2062 + $0x18] sm:$0xff] %v2061
    // Predicated region
    $region46: #{tpu_custom_call.1} parent=1 // pred_check
      _
    $region47: #{tpu_custom_call.1} parent=1 // pred_check_branch
      %2068 = sbr.rel (0) target = $region49
    $region48: #{tpu_custom_call.1} parent=1 // pred_region
      %s2070 = ssub.s32 1024, 1024
      %2071 = vsyncadd [#allocation6], %s2070
      %s2072 = sshll.u32 [#allocation7], 4
      %s2073 = int_to_ptr.vmem [resolvable:$true] %s2072
      %2078 = dma.vmem_to_hbm [thread:$0]  %s2073, 1024, %s10, [#allocation6], 256, 256, 16
    $region49: #{tpu_custom_call.1} parent=1 // pred_fallthru
      _
    // Predicated region
    $region50: #{tpu_custom_call.1} parent=1 // pred_check
      _
    $region51: #{tpu_custom_call.1} parent=1 // pred_check_branch
      %2080 = sbr.rel (0) target = $region53
    $region52: #{tpu_custom_call.1} parent=1 // pred_region
      %2081 = dma.done [#allocation6], 1024
    $region53: #{tpu_custom_call.1} parent=1 // pred_fallthru
      _
    %2082 = vsyncpa [#allocation5], 1
    %2083 = vsyncpa [#allocation6], 1

</llo_original>
